<compile_context>
chip_gen: v7x
topology: tpu7x:2x2x1
jax: 0.10.0
libtpu: 0.0.40
codegen_flags: <defaults>
</compile_context>

<pallas_src>
import math
import functools

import jax
import jax.numpy as jnp
from jax.experimental import pallas as pl
from jax.experimental.pallas import tpu as pltpu

_NEG_BIG = -1e30  # large finite "minus infinity": exp() underflows to exactly 0


def _causal_attn_kernel(q_ref, k_ref, v_ref, kbias_ref,
                        wq_ref, bq_ref, wk_ref, bk_ref, wv_ref, bv_ref,
                        wo_ref, bo_ref, o_ref, attn_ref, *, n_heads, d_k):
    B, T, d_model = q_ref.shape
    h_dim = n_heads * d_k
    f32 = jnp.float32
    scale = f32(1.0 / math.sqrt(d_k))

    # ---- fused Q/K/V projections over the whole batch block -----------------
    qx = q_ref[...].reshape(B * T, d_model).astype(f32)
    kx = k_ref[...].reshape(B * T, d_model).astype(f32)
    vx = v_ref[...].reshape(B * T, d_model).astype(f32)

    # Pre-scale q once (hoists n_heads (T,T) VPU multiplies out of the loop).
    qp = (jnp.dot(qx, wq_ref[...], preferred_element_type=f32) + bq_ref[0]) * scale
    kp = jnp.dot(kx, wk_ref[...], preferred_element_type=f32) + bk_ref[0]
    vp = jnp.dot(vx, wv_ref[...], preferred_element_type=f32) + bv_ref[0]

    qp = qp.reshape(B, T, h_dim)
    kp = kp.reshape(B, T, h_dim)
    vp = vp.reshape(B, T, h_dim)

    # ---- combined causal + pad additive bias, computed ONCE ------------------
    row = jax.lax.broadcasted_iota(jnp.int32, (T, T), 0)
    col = jax.lax.broadcasted_iota(jnp.int32, (T, T), 1)
    causal_bias = jnp.where(row >= col, f32(0.0), f32(_NEG_BIG))   # (T, T)
    bias = causal_bias[None, :, :] + kbias_ref[...]                # (B, T, T)

    # ---- per-head attention; head outputs land in a (B*T, h_dim) VMEM scratch
    #      so the output projection is one big matmul instead of n_heads small
    #      K=d_k matmuls and a running f32 accumulator.
    for h in range(n_heads):
        lo = h * d_k
        qh = qp[:, :, lo:lo + d_k]                                  # (B, T, d_k)
        kh = kp[:, :, lo:lo + d_k]
        vh = vp[:, :, lo:lo + d_k]

        s = jnp.einsum('bqd,bkd->bqk', qh, kh,
                       preferred_element_type=f32) + bias           # (B, T, T)

        # Numerically-stable softmax over the key axis (kept in f32 — v5e has
        # no bf16 VPU/EUP path).
        m = jnp.max(s, axis=-1, keepdims=True)
        e = jnp.exp(s - m)
        l = jnp.sum(e, axis=-1, keepdims=True)
        w = e * pl.reciprocal(l)   # exact (approx=False) to hold 1e-5 tolerance

        ah = jnp.einsum('bqk,bkd->bqd', w, vh,
                        preferred_element_type=f32)                 # (B, T, d_k)
        attn_ref[:, lo:lo + d_k] = ah.reshape(B * T, d_k)

    # ---- single output projection into a lane-dense (128-padded) slab -------
    out = jnp.dot(attn_ref[...], wo_ref[...], preferred_element_type=f32) + bo_ref[0]
    o_ref[...] = out.reshape(B, T, o_ref.shape[2]).astype(o_ref.dtype)


def causal_self_attention(q, k, v, pad_mask, params, *, n_heads, d_k,
                          batch_block=8):
    """q, k, v: [N, T, d_model]; pad_mask: [N, T] (nonzero = keep)."""
    N, T, d_model = q.shape
    wq, bq, wk, bk, wv, bv, wo, bo = params
    h_dim = n_heads * d_k

    # Lane-dense output: pad the output-projection width to a multiple of 128.
    d_out = ((d_model + 127) // 128) * 128
    wo_p = jnp.pad(wo, ((0, 0), (0, d_out - d_model)))
    bo_p = jnp.pad(bo, ((0, 0), (0, d_out - d_model)))

    # Batch several sequences per grid step to amortize per-step overhead.
    B_blk = max(1, min(batch_block, N))
    N_pad = pl.cdiv(N, B_blk) * B_blk

    # Pad mask -> additive key bias, precomputed wrapper-side (no in-kernel
    # compare/broadcast).
    kbias = jnp.where(pad_mask == 0, jnp.float32(_NEG_BIG), jnp.float32(0.0))
    kbias = kbias.reshape(N, 1, T)

    if N_pad != N:
        pb = N_pad - N
        pad3 = ((0, pb), (0, 0), (0, 0))
        q = jnp.pad(q, pad3)
        k = jnp.pad(k, pad3)
        v = jnp.pad(v, pad3)
        kbias = jnp.pad(kbias, pad3)   # zeros == "keep": padded rows stay finite

    kernel = functools.partial(_causal_attn_kernel, n_heads=n_heads, d_k=d_k)

    batch_spec = pl.BlockSpec((B_blk, T, d_model), lambda i: (i, 0, 0))
    full2d = lambda shape: pl.BlockSpec(shape, lambda i: (0, 0))

    out = pl.pallas_call(
        kernel,
        out_shape=jax.ShapeDtypeStruct((N_pad, T, d_out), q.dtype),
        grid_spec=pltpu.PrefetchScalarGridSpec(
            num_scalar_prefetch=0,
            grid=(N_pad // B_blk,),
            in_specs=[
                batch_spec,                                        # q
                batch_spec,                                        # k
                batch_spec,                                        # v
                pl.BlockSpec((B_blk, 1, T), lambda i: (i, 0, 0)),  # key bias
                full2d((d_model, h_dim)), full2d((1, h_dim)),      # Wq, bq
                full2d((d_model, h_dim)), full2d((1, h_dim)),      # Wk, bk
                full2d((d_model, h_dim)), full2d((1, h_dim)),      # Wv, bv
                full2d((h_dim, d_out)),   full2d((1, d_out)),      # Wo, bo (padded)
            ],
            out_specs=pl.BlockSpec((B_blk, T, d_out), lambda i: (i, 0, 0)),
            scratch_shapes=[pltpu.VMEM((B_blk * T, h_dim), jnp.float32)],
        ),
        compiler_params=pltpu.CompilerParams(
            dimension_semantics=("parallel",)),
    )(q, k, v, kbias, wq, bq, wk, bk, wv, bv, wo_p, bo_p)

    return out[:N, :, :d_model]


def _reference_forward(q, k, v, pad_mask, params, *, n_heads, d_k):
    """Pure-JAX reference mirroring the PyTorch module's forward exactly."""
    wq, bq, wk, bk, wv, bv, wo, bo = params
    N, T, _ = q.shape
    qp = q @ wq + bq
    kp = k @ wk + bk
    vp = v @ wv + bv
    qh = qp.reshape(N, T, n_heads, d_k).transpose(0, 2, 1, 3)
    kh = kp.reshape(N, T, n_heads, d_k).transpose(0, 2, 1, 3)
    vh = vp.reshape(N, T, n_heads, d_k).transpose(0, 2, 1, 3)
    s = jnp.einsum('nhtd,nhsd->nhts', qh, kh) / math.sqrt(d_k)
    s = jnp.where(pad_mask[:, None, None, :] == 0, -jnp.inf, s)
    causal = jnp.tril(jnp.ones((T, T), jnp.float32))
    s = jnp.where(causal[None, None] == 0, -jnp.inf, s)
    w = jax.nn.softmax(s, axis=-1)
    a = jnp.einsum('nhts,nhsd->nhtd', w, vh)
    a = a.transpose(0, 2, 1, 3).reshape(N, T, n_heads * d_k)
    return a @ wo + bo


def _init_params(key, d_model, n_heads, d_k):
    """Deterministic nn.Linear-style init (uniform +/- 1/sqrt(fan_in))."""
    h_dim = n_heads * d_k
    ks = jax.random.split(key, 8)

    def lin(kw, kb, fan_in, fan_out):
        bound = 1.0 / math.sqrt(fan_in)
        w = jax.random.uniform(kw, (fan_in, fan_out), jnp.float32, -bound, bound)
        b = jax.random.uniform(kb, (1, fan_out), jnp.float32, -bound, bound)
        return w, b

    wq, bq = lin(ks[0], ks[1], d_model, h_dim)
    wk, bk = lin(ks[2], ks[3], d_model, h_dim)
    wv, bv = lin(ks[4], ks[5], d_model, h_dim)
    wo, bo = lin(ks[6], ks[7], h_dim, d_model)
    return (wq, bq, wk, bk, wv, bv, wo, bo)


if __name__ == "__main__":
    # Small shapes consistent with the module: d_k=8, n_heads=4, d_model=32,
    # max_len >= T; batch N=2, sequence T=8.
    d_k, n_heads, d_model = 8, 4, 32
    N, T = 2, 8

    key = jax.random.PRNGKey(0)
    kp_, kq_, kk_, kv_ = jax.random.split(key, 4)
    params = _init_params(kp_, d_model, n_heads, d_k)

    q = jax.random.normal(kq_, (N, T, d_model), jnp.float32)
    k = jax.random.normal(kk_, (N, T, d_model), jnp.float32)
    v = jax.random.normal(kv_, (N, T, d_model), jnp.float32)
    # pad mask: keep all positions except the last key position.
    pad_mask = jnp.ones((N, T), jnp.float32).at[:, -1].set(0.0)

    out = causal_self_attention(q, k, v, pad_mask, params,
                                n_heads=n_heads, d_k=d_k)
    out = jax.block_until_ready(out)

    ref = _reference_forward(q, k, v, pad_mask, params,
                             n_heads=n_heads, d_k=d_k)
    assert out.shape == (N, T, d_model)
    assert jnp.allclose(out, ref, atol=2e-5, rtol=2e-5), "mismatch vs reference"

    print("KERNEL_OK")
</pallas_src>

<mosaic_0001>
module attributes {stable_mosaic.version = 11 : i64} {
  func.func @_causal_attn_kernel(%arg0: i32, %arg1: memref<2x8x32xf32, #tpu.memory_space<vmem>>, %arg2: memref<2x8x32xf32, #tpu.memory_space<vmem>>, %arg3: memref<2x8x32xf32, #tpu.memory_space<vmem>>, %arg4: memref<2x1x8xf32, #tpu.memory_space<vmem>>, %arg5: memref<32x32xf32, #tpu.memory_space<vmem>>, %arg6: memref<1x32xf32, #tpu.memory_space<vmem>>, %arg7: memref<32x32xf32, #tpu.memory_space<vmem>>, %arg8: memref<1x32xf32, #tpu.memory_space<vmem>>, %arg9: memref<32x32xf32, #tpu.memory_space<vmem>>, %arg10: memref<1x32xf32, #tpu.memory_space<vmem>>, %arg11: memref<32x128xf32, #tpu.memory_space<vmem>>, %arg12: memref<1x128xf32, #tpu.memory_space<vmem>>, %arg13: memref<2x8x128xf32, #tpu.memory_space<vmem>>, %arg14: memref<16x32xf32, #tpu.memory_space<vmem>>) attributes {dimension_semantics = [#tpu.dimension_semantics<parallel>], iteration_bounds = array<i64: 1>, scalar_prefetch = 0 : i64, scratch_operands = 1 : i64, tpu.core_type = #tpu.core_type<tc>, window_params = [{transform_indices = @transform_0, window_bounds = array<i64: 2, 8, 32>}, {transform_indices = @transform_1, window_bounds = array<i64: 2, 8, 32>}, {transform_indices = @transform_2, window_bounds = array<i64: 2, 8, 32>}, {transform_indices = @transform_3, window_bounds = array<i64: 2, 1, 8>}, {pipeline_mode = #tpu.pipeline_mode<synchronous>, transform_indices = @transform_4, window_bounds = array<i64: 32, 32>}, {pipeline_mode = #tpu.pipeline_mode<synchronous>, transform_indices = @transform_5, window_bounds = array<i64: 1, 32>}, {pipeline_mode = #tpu.pipeline_mode<synchronous>, transform_indices = @transform_6, window_bounds = array<i64: 32, 32>}, {pipeline_mode = #tpu.pipeline_mode<synchronous>, transform_indices = @transform_7, window_bounds = array<i64: 1, 32>}, {pipeline_mode = #tpu.pipeline_mode<synchronous>, transform_indices = @transform_8, window_bounds = array<i64: 32, 32>}, {pipeline_mode = #tpu.pipeline_mode<synchronous>, transform_indices = @transform_9, window_bounds = array<i64: 1, 32>}, {pipeline_mode = #tpu.pipeline_mode<synchronous>, transform_indices = @transform_10, window_bounds = array<i64: 32, 128>}, {pipeline_mode = #tpu.pipeline_mode<synchronous>, transform_indices = @transform_11, window_bounds = array<i64: 1, 128>}, {transform_indices = @transform_12, window_bounds = array<i64: 2, 8, 128>}]} {
    %c0 = arith.constant 0 : index
    %c0_0 = arith.constant 0 : index
    %c0_1 = arith.constant 0 : index
    %0 = vector.load %arg1[%c0, %c0_0, %c0_1] : memref<2x8x32xf32, #tpu.memory_space<vmem>>, vector<2x8x32xf32>
    %1 = vector.shape_cast %0 : vector<2x8x32xf32> to vector<16x32xf32>
    %c0_2 = arith.constant 0 : index
    %c0_3 = arith.constant 0 : index
    %c0_4 = arith.constant 0 : index
    %2 = vector.load %arg2[%c0_2, %c0_3, %c0_4] : memref<2x8x32xf32, #tpu.memory_space<vmem>>, vector<2x8x32xf32>
    %3 = vector.shape_cast %2 : vector<2x8x32xf32> to vector<16x32xf32>
    %c0_5 = arith.constant 0 : index
    %c0_6 = arith.constant 0 : index
    %c0_7 = arith.constant 0 : index
    %4 = vector.load %arg3[%c0_5, %c0_6, %c0_7] : memref<2x8x32xf32, #tpu.memory_space<vmem>>, vector<2x8x32xf32>
    %5 = vector.shape_cast %4 : vector<2x8x32xf32> to vector<16x32xf32>
    %c0_8 = arith.constant 0 : index
    %c0_9 = arith.constant 0 : index
    %6 = vector.load %arg5[%c0_8, %c0_9] : memref<32x32xf32, #tpu.memory_space<vmem>>, vector<32x32xf32>
    %cst = arith.constant dense<0.000000e+00> : vector<16x32xf32>
    %7 = tpu.matmul %1, %6, %cst {dimension_numbers = #tpu.dot_dimension_numbers<[1], [0], [0], [1], [0, 0, 1, 1], [], []>} : vector<16x32xf32>, vector<32x32xf32>, vector<16x32xf32> -> vector<16x32xf32>
    %c0_10 = arith.constant 0 : index
    %c0_11 = arith.constant 0 : index
    %8 = vector.load %arg6[%c0_10, %c0_11] : memref<1x32xf32, #tpu.memory_space<vmem>>, vector<1x32xf32>
    %9 = vector.shape_cast %8 : vector<1x32xf32> to vector<32xf32>
    %10 = vector.shape_cast %9 : vector<32xf32> to vector<1x32xf32>
    %11 = vector.broadcast %10 : vector<1x32xf32> to vector<16x32xf32>
    %12 = arith.addf %7, %11 : vector<16x32xf32>
    %cst_12 = arith.constant 0.353553385 : f32
    %13 = vector.broadcast %cst_12 : f32 to vector<16x32xf32>
    %14 = arith.mulf %12, %13 : vector<16x32xf32>
    %c0_13 = arith.constant 0 : index
    %c0_14 = arith.constant 0 : index
    %15 = vector.load %arg7[%c0_13, %c0_14] : memref<32x32xf32, #tpu.memory_space<vmem>>, vector<32x32xf32>
    %cst_15 = arith.constant dense<0.000000e+00> : vector<16x32xf32>
    %16 = tpu.matmul %3, %15, %cst_15 {dimension_numbers = #tpu.dot_dimension_numbers<[1], [0], [0], [1], [0, 0, 1, 1], [], []>} : vector<16x32xf32>, vector<32x32xf32>, vector<16x32xf32> -> vector<16x32xf32>
    %c0_16 = arith.constant 0 : index
    %c0_17 = arith.constant 0 : index
    %17 = vector.load %arg8[%c0_16, %c0_17] : memref<1x32xf32, #tpu.memory_space<vmem>>, vector<1x32xf32>
    %18 = vector.shape_cast %17 : vector<1x32xf32> to vector<32xf32>
    %19 = vector.shape_cast %18 : vector<32xf32> to vector<1x32xf32>
    %20 = vector.broadcast %19 : vector<1x32xf32> to vector<16x32xf32>
    %21 = arith.addf %16, %20 : vector<16x32xf32>
    %c0_18 = arith.constant 0 : index
    %c0_19 = arith.constant 0 : index
    %22 = vector.load %arg9[%c0_18, %c0_19] : memref<32x32xf32, #tpu.memory_space<vmem>>, vector<32x32xf32>
    %cst_20 = arith.constant dense<0.000000e+00> : vector<16x32xf32>
    %23 = tpu.matmul %5, %22, %cst_20 {dimension_numbers = #tpu.dot_dimension_numbers<[1], [0], [0], [1], [0, 0, 1, 1], [], []>} : vector<16x32xf32>, vector<32x32xf32>, vector<16x32xf32> -> vector<16x32xf32>
    %c0_21 = arith.constant 0 : index
    %c0_22 = arith.constant 0 : index
    %24 = vector.load %arg10[%c0_21, %c0_22] : memref<1x32xf32, #tpu.memory_space<vmem>>, vector<1x32xf32>
    %25 = vector.shape_cast %24 : vector<1x32xf32> to vector<32xf32>
    %26 = vector.shape_cast %25 : vector<32xf32> to vector<1x32xf32>
    %27 = vector.broadcast %26 : vector<1x32xf32> to vector<16x32xf32>
    %28 = arith.addf %23, %27 : vector<16x32xf32>
    %29 = vector.shape_cast %14 : vector<16x32xf32> to vector<2x8x32xf32>
    %30 = vector.shape_cast %21 : vector<16x32xf32> to vector<2x8x32xf32>
    %31 = vector.shape_cast %28 : vector<16x32xf32> to vector<2x8x32xf32>
    %32 = tpu.iota {dimensions = array<i32: 0>} : vector<8x8xi32>
    %33 = tpu.iota {dimensions = array<i32: 1>} : vector<8x8xi32>
    %34 = arith.cmpi sge, %32, %33 : vector<8x8xi32>
    %cst_23 = arith.constant 0.000000e+00 : f32
    %cst_24 = arith.constant -1.000000e+30 : f32
    %35 = vector.broadcast %cst_23 : f32 to vector<8x8xf32>
    %36 = vector.broadcast %cst_24 : f32 to vector<8x8xf32>
    %37 = arith.select %34, %35, %36 : vector<8x8xi1>, vector<8x8xf32>
    %38 = vector.shape_cast %37 : vector<8x8xf32> to vector<1x8x8xf32>
    %c0_25 = arith.constant 0 : index
    %c0_26 = arith.constant 0 : index
    %c0_27 = arith.constant 0 : index
    %39 = vector.load %arg4[%c0_25, %c0_26, %c0_27] : memref<2x1x8xf32, #tpu.memory_space<vmem>>, vector<2x1x8xf32>
    %40 = vector.broadcast %38 : vector<1x8x8xf32> to vector<2x8x8xf32>
    %41 = vector.broadcast %39 : vector<2x1x8xf32> to vector<2x8x8xf32>
    %42 = arith.addf %40, %41 : vector<2x8x8xf32>
    %43 = vector.extract_strided_slice %29 {offsets = [0, 0, 0], sizes = [2, 8, 8], strides = [1, 1, 1]} : vector<2x8x32xf32> to vector<2x8x8xf32>
    %44 = vector.extract_strided_slice %30 {offsets = [0, 0, 0], sizes = [2, 8, 8], strides = [1, 1, 1]} : vector<2x8x32xf32> to vector<2x8x8xf32>
    %45 = vector.extract_strided_slice %31 {offsets = [0, 0, 0], sizes = [2, 8, 8], strides = [1, 1, 1]} : vector<2x8x32xf32> to vector<2x8x8xf32>
    "tpu.trace_start"() <{level = 10 : i32, message = "bqd,bkd->bqk"}> : () -> ()
    %cst_28 = arith.constant dense<0.000000e+00> : vector<2x8x8xf32>
    %46 = tpu.matmul %43, %44, %cst_28 {dimension_numbers = #tpu.dot_dimension_numbers<[2], [2], [1], [1], [0, 0, 0, 1, 1, 1], [0], [0]>} : vector<2x8x8xf32>, vector<2x8x8xf32>, vector<2x8x8xf32> -> vector<2x8x8xf32>
    "tpu.trace_stop"() : () -> ()
    %47 = arith.addf %46, %42 : vector<2x8x8xf32>
    %cst_29 = arith.constant dense<0xFF800000> : vector<2x8xf32>
    %48 = vector.multi_reduction <maximumf>, %47, %cst_29 [2] : vector<2x8x8xf32> to vector<2x8xf32>
    %49 = vector.shape_cast %48 : vector<2x8xf32> to vector<2x8x1xf32>
    %50 = vector.broadcast %49 : vector<2x8x1xf32> to vector<2x8x8xf32>
    %51 = arith.subf %47, %50 : vector<2x8x8xf32>
    %52 = math.exp %51 : vector<2x8x8xf32>
    %cst_30 = arith.constant dense<0.000000e+00> : vector<2x8xf32>
    %53 = vector.multi_reduction <add>, %52, %cst_30 [2] : vector<2x8x8xf32> to vector<2x8xf32>
    %54 = vector.shape_cast %53 : vector<2x8xf32> to vector<2x8x1xf32>
    %55 = tpu.reciprocal %54 : vector<2x8x1xf32> -> vector<2x8x1xf32>
    %56 = vector.broadcast %55 : vector<2x8x1xf32> to vector<2x8x8xf32>
    %57 = arith.mulf %52, %56 : vector<2x8x8xf32>
    "tpu.trace_start"() <{level = 10 : i32, message = "bqk,bkd->bqd"}> : () -> ()
    %cst_31 = arith.constant dense<0.000000e+00> : vector<2x8x8xf32>
    %58 = tpu.matmul %57, %45, %cst_31 {dimension_numbers = #tpu.dot_dimension_numbers<[2], [1], [1], [2], [0, 0, 0, 1, 1, 2], [0], [0]>} : vector<2x8x8xf32>, vector<2x8x8xf32>, vector<2x8x8xf32> -> vector<2x8x8xf32>
    "tpu.trace_stop"() : () -> ()
    %59 = vector.shape_cast %58 : vector<2x8x8xf32> to vector<16x8xf32>
    %c0_32 = arith.constant 0 : index
    %c0_33 = arith.constant 0 : index
    %60 = vector.load %arg14[%c0_32, %c0_33] : memref<16x32xf32, #tpu.memory_space<vmem>>, vector<16x8xf32>
    tpu.vector_store %arg14[%c0_32, %c0_33], %59 {strides = array<i32>} : memref<16x32xf32, #tpu.memory_space<vmem>>, vector<16x8xf32>,
    %61 = vector.extract_strided_slice %29 {offsets = [0, 0, 8], sizes = [2, 8, 8], strides = [1, 1, 1]} : vector<2x8x32xf32> to vector<2x8x8xf32>
    %62 = vector.extract_strided_slice %30 {offsets = [0, 0, 8], sizes = [2, 8, 8], strides = [1, 1, 1]} : vector<2x8x32xf32> to vector<2x8x8xf32>
    %63 = vector.extract_strided_slice %31 {offsets = [0, 0, 8], sizes = [2, 8, 8], strides = [1, 1, 1]} : vector<2x8x32xf32> to vector<2x8x8xf32>
    "tpu.trace_start"() <{level = 10 : i32, message = "bqd,bkd->bqk"}> : () -> ()
    %cst_34 = arith.constant dense<0.000000e+00> : vector<2x8x8xf32>
    %64 = tpu.matmul %61, %62, %cst_34 {dimension_numbers = #tpu.dot_dimension_numbers<[2], [2], [1], [1], [0, 0, 0, 1, 1, 1], [0], [0]>} : vector<2x8x8xf32>, vector<2x8x8xf32>, vector<2x8x8xf32> -> vector<2x8x8xf32>
    "tpu.trace_stop"() : () -> ()
    %65 = arith.addf %64, %42 : vector<2x8x8xf32>
    %cst_35 = arith.constant dense<0xFF800000> : vector<2x8xf32>
    %66 = vector.multi_reduction <maximumf>, %65, %cst_35 [2] : vector<2x8x8xf32> to vector<2x8xf32>
    %67 = vector.shape_cast %66 : vector<2x8xf32> to vector<2x8x1xf32>
    %68 = vector.broadcast %67 : vector<2x8x1xf32> to vector<2x8x8xf32>
    %69 = arith.subf %65, %68 : vector<2x8x8xf32>
    %70 = math.exp %69 : vector<2x8x8xf32>
    %cst_36 = arith.constant dense<0.000000e+00> : vector<2x8xf32>
    %71 = vector.multi_reduction <add>, %70, %cst_36 [2] : vector<2x8x8xf32> to vector<2x8xf32>
    %72 = vector.shape_cast %71 : vector<2x8xf32> to vector<2x8x1xf32>
    %73 = tpu.reciprocal %72 : vector<2x8x1xf32> -> vector<2x8x1xf32>
    %74 = vector.broadcast %73 : vector<2x8x1xf32> to vector<2x8x8xf32>
    %75 = arith.mulf %70, %74 : vector<2x8x8xf32>
    "tpu.trace_start"() <{level = 10 : i32, message = "bqk,bkd->bqd"}> : () -> ()
    %cst_37 = arith.constant dense<0.000000e+00> : vector<2x8x8xf32>
    %76 = tpu.matmul %75, %63, %cst_37 {dimension_numbers = #tpu.dot_dimension_numbers<[2], [1], [1], [2], [0, 0, 0, 1, 1, 2], [0], [0]>} : vector<2x8x8xf32>, vector<2x8x8xf32>, vector<2x8x8xf32> -> vector<2x8x8xf32>
    "tpu.trace_stop"() : () -> ()
    %77 = vector.shape_cast %76 : vector<2x8x8xf32> to vector<16x8xf32>
    %c0_38 = arith.constant 0 : index
    %c8 = arith.constant 8 : index
    %78 = vector.load %arg14[%c0_38, %c8] : memref<16x32xf32, #tpu.memory_space<vmem>>, vector<16x8xf32>
    tpu.vector_store %arg14[%c0_38, %c8], %77 {strides = array<i32>} : memref<16x32xf32, #tpu.memory_space<vmem>>, vector<16x8xf32>,
    %79 = vector.extract_strided_slice %29 {offsets = [0, 0, 16], sizes = [2, 8, 8], strides = [1, 1, 1]} : vector<2x8x32xf32> to vector<2x8x8xf32>
    %80 = vector.extract_strided_slice %30 {offsets = [0, 0, 16], sizes = [2, 8, 8], strides = [1, 1, 1]} : vector<2x8x32xf32> to vector<2x8x8xf32>
    %81 = vector.extract_strided_slice %31 {offsets = [0, 0, 16], sizes = [2, 8, 8], strides = [1, 1, 1]} : vector<2x8x32xf32> to vector<2x8x8xf32>
    "tpu.trace_start"() <{level = 10 : i32, message = "bqd,bkd->bqk"}> : () -> ()
    %cst_39 = arith.constant dense<0.000000e+00> : vector<2x8x8xf32>
    %82 = tpu.matmul %79, %80, %cst_39 {dimension_numbers = #tpu.dot_dimension_numbers<[2], [2], [1], [1], [0, 0, 0, 1, 1, 1], [0], [0]>} : vector<2x8x8xf32>, vector<2x8x8xf32>, vector<2x8x8xf32> -> vector<2x8x8xf32>
    "tpu.trace_stop"() : () -> ()
    %83 = arith.addf %82, %42 : vector<2x8x8xf32>
    %cst_40 = arith.constant dense<0xFF800000> : vector<2x8xf32>
    %84 = vector.multi_reduction <maximumf>, %83, %cst_40 [2] : vector<2x8x8xf32> to vector<2x8xf32>
    %85 = vector.shape_cast %84 : vector<2x8xf32> to vector<2x8x1xf32>
    %86 = vector.broadcast %85 : vector<2x8x1xf32> to vector<2x8x8xf32>
    %87 = arith.subf %83, %86 : vector<2x8x8xf32>
    %88 = math.exp %87 : vector<2x8x8xf32>
    %cst_41 = arith.constant dense<0.000000e+00> : vector<2x8xf32>
    %89 = vector.multi_reduction <add>, %88, %cst_41 [2] : vector<2x8x8xf32> to vector<2x8xf32>
    %90 = vector.shape_cast %89 : vector<2x8xf32> to vector<2x8x1xf32>
    %91 = tpu.reciprocal %90 : vector<2x8x1xf32> -> vector<2x8x1xf32>
    %92 = vector.broadcast %91 : vector<2x8x1xf32> to vector<2x8x8xf32>
    %93 = arith.mulf %88, %92 : vector<2x8x8xf32>
    "tpu.trace_start"() <{level = 10 : i32, message = "bqk,bkd->bqd"}> : () -> ()
    %cst_42 = arith.constant dense<0.000000e+00> : vector<2x8x8xf32>
    %94 = tpu.matmul %93, %81, %cst_42 {dimension_numbers = #tpu.dot_dimension_numbers<[2], [1], [1], [2], [0, 0, 0, 1, 1, 2], [0], [0]>} : vector<2x8x8xf32>, vector<2x8x8xf32>, vector<2x8x8xf32> -> vector<2x8x8xf32>
    "tpu.trace_stop"() : () -> ()
    %95 = vector.shape_cast %94 : vector<2x8x8xf32> to vector<16x8xf32>
    %c0_43 = arith.constant 0 : index
    %c16 = arith.constant 16 : index
    %96 = vector.load %arg14[%c0_43, %c16] : memref<16x32xf32, #tpu.memory_space<vmem>>, vector<16x8xf32>
    tpu.vector_store %arg14[%c0_43, %c16], %95 {strides = array<i32>} : memref<16x32xf32, #tpu.memory_space<vmem>>, vector<16x8xf32>,
    %97 = vector.extract_strided_slice %29 {offsets = [0, 0, 24], sizes = [2, 8, 8], strides = [1, 1, 1]} : vector<2x8x32xf32> to vector<2x8x8xf32>
    %98 = vector.extract_strided_slice %30 {offsets = [0, 0, 24], sizes = [2, 8, 8], strides = [1, 1, 1]} : vector<2x8x32xf32> to vector<2x8x8xf32>
    %99 = vector.extract_strided_slice %31 {offsets = [0, 0, 24], sizes = [2, 8, 8], strides = [1, 1, 1]} : vector<2x8x32xf32> to vector<2x8x8xf32>
    "tpu.trace_start"() <{level = 10 : i32, message = "bqd,bkd->bqk"}> : () -> ()
    %cst_44 = arith.constant dense<0.000000e+00> : vector<2x8x8xf32>
    %100 = tpu.matmul %97, %98, %cst_44 {dimension_numbers = #tpu.dot_dimension_numbers<[2], [2], [1], [1], [0, 0, 0, 1, 1, 1], [0], [0]>} : vector<2x8x8xf32>, vector<2x8x8xf32>, vector<2x8x8xf32> -> vector<2x8x8xf32>
    "tpu.trace_stop"() : () -> ()
    %101 = arith.addf %100, %42 : vector<2x8x8xf32>
    %cst_45 = arith.constant dense<0xFF800000> : vector<2x8xf32>
    %102 = vector.multi_reduction <maximumf>, %101, %cst_45 [2] : vector<2x8x8xf32> to vector<2x8xf32>
    %103 = vector.shape_cast %102 : vector<2x8xf32> to vector<2x8x1xf32>
    %104 = vector.broadcast %103 : vector<2x8x1xf32> to vector<2x8x8xf32>
    %105 = arith.subf %101, %104 : vector<2x8x8xf32>
    %106 = math.exp %105 : vector<2x8x8xf32>
    %cst_46 = arith.constant dense<0.000000e+00> : vector<2x8xf32>
    %107 = vector.multi_reduction <add>, %106, %cst_46 [2] : vector<2x8x8xf32> to vector<2x8xf32>
    %108 = vector.shape_cast %107 : vector<2x8xf32> to vector<2x8x1xf32>
    %109 = tpu.reciprocal %108 : vector<2x8x1xf32> -> vector<2x8x1xf32>
    %110 = vector.broadcast %109 : vector<2x8x1xf32> to vector<2x8x8xf32>
    %111 = arith.mulf %106, %110 : vector<2x8x8xf32>
    "tpu.trace_start"() <{level = 10 : i32, message = "bqk,bkd->bqd"}> : () -> ()
    %cst_47 = arith.constant dense<0.000000e+00> : vector<2x8x8xf32>
    %112 = tpu.matmul %111, %99, %cst_47 {dimension_numbers = #tpu.dot_dimension_numbers<[2], [1], [1], [2], [0, 0, 0, 1, 1, 2], [0], [0]>} : vector<2x8x8xf32>, vector<2x8x8xf32>, vector<2x8x8xf32> -> vector<2x8x8xf32>
    "tpu.trace_stop"() : () -> ()
    %113 = vector.shape_cast %112 : vector<2x8x8xf32> to vector<16x8xf32>
    %c0_48 = arith.constant 0 : index
    %c24 = arith.constant 24 : index
    %114 = vector.load %arg14[%c0_48, %c24] : memref<16x32xf32, #tpu.memory_space<vmem>>, vector<16x8xf32>
    tpu.vector_store %arg14[%c0_48, %c24], %113 {strides = array<i32>} : memref<16x32xf32, #tpu.memory_space<vmem>>, vector<16x8xf32>,
    %c0_49 = arith.constant 0 : index
    %c0_50 = arith.constant 0 : index
    %115 = vector.load %arg14[%c0_49, %c0_50] : memref<16x32xf32, #tpu.memory_space<vmem>>, vector<16x32xf32>
    %c0_51 = arith.constant 0 : index
    %c0_52 = arith.constant 0 : index
    %116 = vector.load %arg11[%c0_51, %c0_52] : memref<32x128xf32, #tpu.memory_space<vmem>>, vector<32x128xf32>
    %cst_53 = arith.constant dense<0.000000e+00> : vector<16x128xf32>
    %117 = tpu.matmul %115, %116, %cst_53 {dimension_numbers = #tpu.dot_dimension_numbers<[1], [0], [0], [1], [0, 0, 1, 1], [], []>} : vector<16x32xf32>, vector<32x128xf32>, vector<16x128xf32> -> vector<16x128xf32>
    %c0_54 = arith.constant 0 : index
    %c0_55 = arith.constant 0 : index
    %118 = vector.load %arg12[%c0_54, %c0_55] : memref<1x128xf32, #tpu.memory_space<vmem>>, vector<1x128xf32>
    %119 = vector.shape_cast %118 : vector<1x128xf32> to vector<128xf32>
    %120 = vector.shape_cast %119 : vector<128xf32> to vector<1x128xf32>
    %121 = vector.broadcast %120 : vector<1x128xf32> to vector<16x128xf32>
    %122 = arith.addf %117, %121 : vector<16x128xf32>
    %123 = vector.shape_cast %122 : vector<16x128xf32> to vector<2x8x128xf32>
    %c0_56 = arith.constant 0 : index
    %c0_57 = arith.constant 0 : index
    %c0_58 = arith.constant 0 : index
    %124 = vector.load %arg13[%c0_56, %c0_57, %c0_58] : memref<2x8x128xf32, #tpu.memory_space<vmem>>, vector<2x8x128xf32>
    tpu.vector_store %arg13[%c0_56, %c0_57, %c0_58], %123 {strides = array<i32>} : memref<2x8x128xf32, #tpu.memory_space<vmem>>, vector<2x8x128xf32>,
    return
  }
  func.func @transform_0(%arg0: i32) -> (i32, i32, i32) {
    %c0_i32 = arith.constant 0 : i32
    %c0_i32_0 = arith.constant 0 : i32
    %c0_i32_1 = arith.constant 0 : i32
    return %arg0, %c0_i32, %c0_i32_0 : i32, i32, i32
  }
  func.func @transform_1(%arg0: i32) -> (i32, i32, i32) {
    %c0_i32 = arith.constant 0 : i32
    %c0_i32_0 = arith.constant 0 : i32
    %c0_i32_1 = arith.constant 0 : i32
    return %arg0, %c0_i32, %c0_i32_0 : i32, i32, i32
  }
  func.func @transform_2(%arg0: i32) -> (i32, i32, i32) {
    %c0_i32 = arith.constant 0 : i32
    %c0_i32_0 = arith.constant 0 : i32
    %c0_i32_1 = arith.constant 0 : i32
    return %arg0, %c0_i32, %c0_i32_0 : i32, i32, i32
  }
  func.func @transform_3(%arg0: i32) -> (i32, i32, i32) {
    %c0_i32 = arith.constant 0 : i32
    %c0_i32_0 = arith.constant 0 : i32
    %c0_i32_1 = arith.constant 0 : i32
    return %arg0, %c0_i32, %c0_i32_0 : i32, i32, i32
  }
  func.func @transform_4(%arg0: i32) -> (i32, i32) {
    %c0_i32 = arith.constant 0 : i32
    %c0_i32_0 = arith.constant 0 : i32
    %c0_i32_1 = arith.constant 0 : i32
    return %c0_i32, %c0_i32_0 : i32, i32
  }
  func.func @transform_5(%arg0: i32) -> (i32, i32) {
    %c0_i32 = arith.constant 0 : i32
    %c0_i32_0 = arith.constant 0 : i32
    %c0_i32_1 = arith.constant 0 : i32
    return %c0_i32, %c0_i32_0 : i32, i32
  }
  func.func @transform_6(%arg0: i32) -> (i32, i32) {
    %c0_i32 = arith.constant 0 : i32
    %c0_i32_0 = arith.constant 0 : i32
    %c0_i32_1 = arith.constant 0 : i32
    return %c0_i32, %c0_i32_0 : i32, i32
  }
  func.func @transform_7(%arg0: i32) -> (i32, i32) {
    %c0_i32 = arith.constant 0 : i32
    %c0_i32_0 = arith.constant 0 : i32
    %c0_i32_1 = arith.constant 0 : i32
    return %c0_i32, %c0_i32_0 : i32, i32
  }
  func.func @transform_8(%arg0: i32) -> (i32, i32) {
    %c0_i32 = arith.constant 0 : i32
    %c0_i32_0 = arith.constant 0 : i32
    %c0_i32_1 = arith.constant 0 : i32
    return %c0_i32, %c0_i32_0 : i32, i32
  }
  func.func @transform_9(%arg0: i32) -> (i32, i32) {
    %c0_i32 = arith.constant 0 : i32
    %c0_i32_0 = arith.constant 0 : i32
    %c0_i32_1 = arith.constant 0 : i32
    return %c0_i32, %c0_i32_0 : i32, i32
  }
  func.func @transform_10(%arg0: i32) -> (i32, i32) {
    %c0_i32 = arith.constant 0 : i32
    %c0_i32_0 = arith.constant 0 : i32
    %c0_i32_1 = arith.constant 0 : i32
    return %c0_i32, %c0_i32_0 : i32, i32
  }
  func.func @transform_11(%arg0: i32) -> (i32, i32) {
    %c0_i32 = arith.constant 0 : i32
    %c0_i32_0 = arith.constant 0 : i32
    %c0_i32_1 = arith.constant 0 : i32
    return %c0_i32, %c0_i32_0 : i32, i32
  }
  func.func @transform_12(%arg0: i32) -> (i32, i32, i32) {
    %c0_i32 = arith.constant 0 : i32
    %c0_i32_0 = arith.constant 0 : i32
    %c0_i32_1 = arith.constant 0 : i32
    return %arg0, %c0_i32, %c0_i32_0 : i32, i32, i32
  }
}

</mosaic_0001>

<llo_original>
// kernel: tpu_custom_call.1
$region0: #{tpu_custom_call.1}
  #allocation0 [shape = 'u32[]', space=smem, size = 0x4, offset = 0x4, fixed_abs, tag = 'smem constant byte address 0x4 - core index']
  #allocation1 [shape = 'u32[144,128]{1,0:T(1,128)}', space=vmem, size = 0x12000, scoped, tag = 'internal scratch']
  #allocation2 [shape = 'f32[16,32]{1,0:T(8,128)}', space=vmem, size = 0x2000, scoped, tag = 'scratch operand']
  %s0 = inlined_call_operand.hbm [shape: f32[2,8,32], index: 0, kind: input, shape index: {}]
  %s1 = inlined_call_operand.hbm [shape: f32[2,8,32], index: 1, kind: input, shape index: {}]
  %s2 = inlined_call_operand.hbm [shape: f32[2,8,32], index: 2, kind: input, shape index: {}]
  %s3 = inlined_call_operand.vmem [shape: f32[2,1,8], index: 3, kind: input, shape index: {}]
  %s4 = inlined_call_operand.hbm [shape: f32[32,32], index: 4, kind: input, shape index: {}]
  %s5 = inlined_call_operand.vmem [shape: f32[1,32], index: 5, kind: input, shape index: {}]
  %s6 = inlined_call_operand.hbm [shape: f32[32,32], index: 6, kind: input, shape index: {}]
  %s7 = inlined_call_operand.vmem [shape: f32[1,32], index: 7, kind: input, shape index: {}]
  %s8 = inlined_call_operand.hbm [shape: f32[32,32], index: 8, kind: input, shape index: {}]
  %s9 = inlined_call_operand.vmem [shape: f32[1,32], index: 9, kind: input, shape index: {}]
  %s10 = inlined_call_operand.vmem [shape: f32[32,128], index: 10, kind: input, shape index: {}]
  %s11 = inlined_call_operand.vmem [shape: f32[1,128], index: 11, kind: input, shape index: {}]
  %s12 = inlined_call_operand.hbm [shape: f32[2,8,128], index: 12, kind: output, shape index: {}]
  %s13 = sld [smem:[#allocation0]]
  $region82: #{tpu_custom_call.1} parent=0
    _
  %s15 = ssub.s32 1, %s13
  %s16 = scalar_select 0, %s15, %s13
  $region1: #{tpu_custom_call.1} parent=0
    #allocation3 [shape = 'u8[8192]{0}', space=vmem, size = 0x2000, scoped, tag = 'input window, operand 0, single buffered']
    #allocation4 [shape = 's32[1]{0}', space=sflag, size = 0x4, scoped, tag = 'scoped memory for tpu_custom_call.1']
    #allocation5 [shape = 's32[1]{0}', space=sflag, size = 0x4, scoped, tag = 'scoped memory for tpu_custom_call.1']
    #allocation6 [shape = 'u8[8192]{0}', space=vmem, size = 0x2000, scoped, tag = 'input window, operand 1, single buffered']
    #allocation7 [shape = 's32[1]{0}', space=sflag, size = 0x4, scoped, tag = 'scoped memory for tpu_custom_call.1']
    #allocation8 [shape = 'u8[8192]{0}', space=vmem, size = 0x2000, scoped, tag = 'input window, operand 2, single buffered']
    #allocation9 [shape = 'u8[16384]{0}', space=vmem, size = 0x4000, scoped, tag = 'input window, operand 4, single buffered']
    #allocation10 [shape = 's32[1]{0}', space=sflag, size = 0x4, scoped, tag = 'scoped memory for tpu_custom_call.1']
    #allocation11 [shape = 'u8[16384]{0}', space=vmem, size = 0x4000, scoped, tag = 'input window, operand 6, single buffered']
    #allocation12 [shape = 'u8[16384]{0}', space=vmem, size = 0x4000, scoped, tag = 'input window, operand 8, single buffered']
    #allocation13 [shape = 's32[1]{0}', space=sflag, size = 0x4, scoped, tag = 'scoped memory for tpu_custom_call.1']
    #allocation14 [shape = 'u8[8192]{0}', space=vmem, size = 0x2000, scoped, tag = 'output window, operand 0, single buffered']
    %17 = vsyncpa [#allocation4], 0
    %18 = vsyncpa [#allocation7], 0
    %19 = vsyncpa [#allocation10], 0
    %20 = vsyncpa [#allocation13], 0
    %21 = vsyncpa [#allocation5], 0
    // Predicated region
    $region2: #{tpu_custom_call.1} parent=1 // pred_check
      _
    $region3: #{tpu_custom_call.1} parent=1 // pred_check_branch
      %23 = sbr.rel (0) target = $region5
    $region4: #{tpu_custom_call.1} parent=1 // pred_region
      %s25 = ssub.s32 256, 256
      %26 = vsyncadd [#allocation4], %s25
      %s27 = sshll.u32 [#allocation3], 4
      %s28 = int_to_ptr.vmem [resolvable:$true] %s27
      %33 = dma.hbm_to_vmem [thread:$0]  %s0, 256, %s28, [#allocation4], 128, 128, 8
    $region5: #{tpu_custom_call.1} parent=1 // pred_fallthru
      _
    // Predicated region
    $region6: #{tpu_custom_call.1} parent=1 // pred_check
      _
    $region7: #{tpu_custom_call.1} parent=1 // pred_check_branch
      %35 = sbr.rel (0) target = $region9
    $region8: #{tpu_custom_call.1} parent=1 // pred_region
      %s37 = ssub.s32 256, 256
      %38 = vsyncadd [#allocation7], %s37
      %s39 = sshll.u32 [#allocation6], 4
      %s40 = int_to_ptr.vmem [resolvable:$true] %s39
      %45 = dma.hbm_to_vmem [thread:$0]  %s1, 256, %s40, [#allocation7], 128, 128, 8
    $region9: #{tpu_custom_call.1} parent=1 // pred_fallthru
      _
    // Predicated region
    $region10: #{tpu_custom_call.1} parent=1 // pred_check
      _
    $region11: #{tpu_custom_call.1} parent=1 // pred_check_branch
      %47 = sbr.rel (0) target = $region13
    $region12: #{tpu_custom_call.1} parent=1 // pred_region
      %s49 = ssub.s32 256, 256
      %50 = vsyncadd [#allocation7], %s49
      %s51 = sshll.u32 [#allocation8], 4
      %s52 = int_to_ptr.vmem [resolvable:$true] %s51
      %57 = dma.hbm_to_vmem [thread:$0]  %s2, 256, %s52, [#allocation7], 128, 128, 8
    $region13: #{tpu_custom_call.1} parent=1 // pred_fallthru
      _
    // Predicated region
    $region14: #{tpu_custom_call.1} parent=1 // pred_check
      _
    $region15: #{tpu_custom_call.1} parent=1 // pred_check_branch
      %59 = sbr.rel (0) target = $region17
    $region16: #{tpu_custom_call.1} parent=1 // pred_region
      _
    $region17: #{tpu_custom_call.1} parent=1 // pred_fallthru
      _
    // Predicated region
    $region18: #{tpu_custom_call.1} parent=1 // pred_check
      _
    $region19: #{tpu_custom_call.1} parent=1 // pred_check_branch
      %61 = sbr.rel (0) target = $region21
    $region20: #{tpu_custom_call.1} parent=1 // pred_region
      %s63 = ssub.s32 512, 512
      %64 = vsyncadd [#allocation10], %s63
      %s65 = sshll.u32 [#allocation9], 4
      %s66 = int_to_ptr.vmem [resolvable:$true] %s65
      %71 = dma.hbm_to_vmem [thread:$0]  %s4, 512, %s66, [#allocation10], 128, 128, 8
    $region21: #{tpu_custom_call.1} parent=1 // pred_fallthru
      _
    // Predicated region
    $region22: #{tpu_custom_call.1} parent=1 // pred_check
      _
    $region23: #{tpu_custom_call.1} parent=1 // pred_check_branch
      %73 = sbr.rel (0) target = $region25
    $region24: #{tpu_custom_call.1} parent=1 // pred_region
      _
    $region25: #{tpu_custom_call.1} parent=1 // pred_fallthru
      _
    // Predicated region
    $region26: #{tpu_custom_call.1} parent=1 // pred_check
      _
    $region27: #{tpu_custom_call.1} parent=1 // pred_check_branch
      %75 = sbr.rel (0) target = $region29
    $region28: #{tpu_custom_call.1} parent=1 // pred_region
      %s77 = ssub.s32 512, 512
      %78 = vsyncadd [#allocation10], %s77
      %s79 = sshll.u32 [#allocation11], 4
      %s80 = int_to_ptr.vmem [resolvable:$true] %s79
      %85 = dma.hbm_to_vmem [thread:$0]  %s6, 512, %s80, [#allocation10], 128, 128, 8
    $region29: #{tpu_custom_call.1} parent=1 // pred_fallthru
      _
    // Predicated region
    $region30: #{tpu_custom_call.1} parent=1 // pred_check
      _
    $region31: #{tpu_custom_call.1} parent=1 // pred_check_branch
      %87 = sbr.rel (0) target = $region33
    $region32: #{tpu_custom_call.1} parent=1 // pred_region
      _
    $region33: #{tpu_custom_call.1} parent=1 // pred_fallthru
      _
    // Predicated region
    $region34: #{tpu_custom_call.1} parent=1 // pred_check
      _
    $region35: #{tpu_custom_call.1} parent=1 // pred_check_branch
      %89 = sbr.rel (0) target = $region37
    $region36: #{tpu_custom_call.1} parent=1 // pred_region
      %s91 = ssub.s32 512, 512
      %92 = vsyncadd [#allocation13], %s91
      %s93 = sshll.u32 [#allocation12], 4
      %s94 = int_to_ptr.vmem [resolvable:$true] %s93
      %99 = dma.hbm_to_vmem [thread:$0]  %s8, 512, %s94, [#allocation13], 128, 128, 8
    $region37: #{tpu_custom_call.1} parent=1 // pred_fallthru
      _
    // Predicated region
    $region38: #{tpu_custom_call.1} parent=1 // pred_check
      _
    $region39: #{tpu_custom_call.1} parent=1 // pred_check_branch
      %101 = sbr.rel (0) target = $region41
    $region40: #{tpu_custom_call.1} parent=1 // pred_region
      _
    $region41: #{tpu_custom_call.1} parent=1 // pred_fallthru
      _
    // Predicated region
    $region42: #{tpu_custom_call.1} parent=1 // pred_check
      _
    $region43: #{tpu_custom_call.1} parent=1 // pred_check_branch
      %103 = sbr.rel (0) target = $region45
    $region44: #{tpu_custom_call.1} parent=1 // pred_region
      _
    $region45: #{tpu_custom_call.1} parent=1 // pred_fallthru
      _
    // Predicated region
    $region46: #{tpu_custom_call.1} parent=1 // pred_check
      _
    $region47: #{tpu_custom_call.1} parent=1 // pred_check_branch
      %105 = sbr.rel (0) target = $region49
    $region48: #{tpu_custom_call.1} parent=1 // pred_region
      _
    $region49: #{tpu_custom_call.1} parent=1 // pred_fallthru
      _
    // Predicated region
    $region50: #{tpu_custom_call.1} parent=1 // pred_check
      _
    $region51: #{tpu_custom_call.1} parent=1 // pred_check_branch
      %107 = sbr.rel (0) target = $region53
    $region52: #{tpu_custom_call.1} parent=1 // pred_region
      %108 = dma.done [#allocation4], 256
    $region53: #{tpu_custom_call.1} parent=1 // pred_fallthru
      _
    // Predicated region
    $region54: #{tpu_custom_call.1} parent=1 // pred_check
      _
    $region55: #{tpu_custom_call.1} parent=1 // pred_check_branch
      %110 = sbr.rel (0) target = $region57
    $region56: #{tpu_custom_call.1} parent=1 // pred_region
      %111 = dma.done [#allocation7], 256
    $region57: #{tpu_custom_call.1} parent=1 // pred_fallthru
      _
    // Predicated region
    $region58: #{tpu_custom_call.1} parent=1 // pred_check
      _
    $region59: #{tpu_custom_call.1} parent=1 // pred_check_branch
      %113 = sbr.rel (0) target = $region61
    $region60: #{tpu_custom_call.1} parent=1 // pred_region
      %114 = dma.done [#allocation7], 256
    $region61: #{tpu_custom_call.1} parent=1 // pred_fallthru
      _
    // Predicated region
    $region62: #{tpu_custom_call.1} parent=1 // pred_check
      _
    $region63: #{tpu_custom_call.1} parent=1 // pred_check_branch
      %116 = sbr.rel (0) target = $region65
    $region64: #{tpu_custom_call.1} parent=1 // pred_region
      %117 = dma.done [#allocation10], 512
    $region65: #{tpu_custom_call.1} parent=1 // pred_fallthru
      _
    // Predicated region
    $region66: #{tpu_custom_call.1} parent=1 // pred_check
      _
    $region67: #{tpu_custom_call.1} parent=1 // pred_check_branch
      %119 = sbr.rel (0) target = $region69
    $region68: #{tpu_custom_call.1} parent=1 // pred_region
      %120 = dma.done [#allocation10], 512
    $region69: #{tpu_custom_call.1} parent=1 // pred_fallthru
      _
    // Predicated region
    $region70: #{tpu_custom_call.1} parent=1 // pred_check
      _
    $region71: #{tpu_custom_call.1} parent=1 // pred_check_branch
      %122 = sbr.rel (0) target = $region73
    $region72: #{tpu_custom_call.1} parent=1 // pred_region
      %123 = dma.done [#allocation13], 512
    $region73: #{tpu_custom_call.1} parent=1 // pred_fallthru
      _
    %v124 = vld [vmem:[#allocation3] sm:$0xff]
    %v125 = vld [vmem:[#allocation3 + $0x8] sm:$0xff]
    %v126 = vld [vmem:[#allocation6] sm:$0xff]
    %v127 = vld [vmem:[#allocation6 + $0x8] sm:$0xff]
    %v128 = vld [vmem:[#allocation8] sm:$0xff]
    %v129 = vld [vmem:[#allocation8 + $0x8] sm:$0xff]
    %v130 = vld [vmem:[#allocation9] sm:$0xff]
    %v131 = vld [vmem:[#allocation9 + $0x8] sm:$0xff]
    %v132 = vld [vmem:[#allocation9 + $0x10] sm:$0xff]
    %v133 = vld [vmem:[#allocation9 + $0x18] sm:$0xff]
    %v134 = vld [vmem:[%s5] sm:$0x1]
    %v136 = vlaneseq
    %v137 = vshrl.u32 %v136, 7
    %v138 = vsub.s32 0, %v137
    %v139 = vrot.slane %v134, %v138
    %vm141 = vcmask 261120
    %v143 = vsel %vm141, %v124, 0
    %v146 = vsel %vm141, %v125, 0
    %148 = vmatprep.subr.mxu0 0.0
    %149 = vmatpush1.msra.mxu0 %v130
    %150 = vmatprep.subr.mxu0 0.0
    %151 = vmatpush1.msra.mxu0 %v131
    %152 = vmatprep.subr.mxu0 0.0
    %153 = vmatpush1.msra.mxu0 %v132
    %154 = vmatprep.subr.mxu0 0.0
    %155 = vmatpush1.msra.mxu0 %v133
    %156 = vmatprep.subr.mxu0 0.0
    %157 = vmatpush1.msra.mxu0 0.0
    %158 = vmatprep.subr.mxu0 0.0
    %159 = vmatpush1.msra.mxu0 0.0
    %160 = vmatprep.subr.mxu0 0.0
    %161 = vmatpush1.msra.mxu0 0.0
    %162 = vmatprep.subr.mxu0 0.0
    %163 = vmatpush1.msra.mxu0 0.0
    %164 = vmatprep.subr.mxu0 0.0
    %165 = vmatpush1.msra.mxu0 0.0
    %166 = vmatprep.subr.mxu0 0.0
    %167 = vmatpush1.msra.mxu0 0.0
    %168 = vmatprep.subr.mxu0 0.0
    %169 = vmatpush1.msra.mxu0 0.0
    %170 = vmatprep.subr.mxu0 0.0
    %171 = vmatpush1.msra.mxu0 0.0
    %172 = vmatprep.subr.mxu0 0.0
    %173 = vmatpush1.msra.mxu0 0.0
    %174 = vmatprep.subr.mxu0 0.0
    %175 = vmatpush1.msra.mxu0 0.0
    %176 = vmatprep.subr.mxu0 0.0
    %177 = vmatpush1.msra.mxu0 0.0
    %178 = vmatprep.subr.mxu0 0.0
    %179 = vmatpush1.msra.mxu0 0.0
    %180 = vmatprep.subr.mxu0 0.0
    %181 = vmatpush1.msra.mxu0 0.0
    %182 = vmatprep.subr.mxu0 0.0
    %183 = vmatpush1.msra.mxu0 0.0
    %184 = vmatprep.subr.mxu0 0.0
    %185 = vmatpush1.msra.mxu0 0.0
    %186 = vmatprep.subr.mxu0 0.0
    %187 = vmatpush1.msra.mxu0 0.0
    %188 = vmatprep.subr.mxu0 0.0
    %189 = vmatpush1.msra.mxu0 0.0
    %190 = vmatprep.subr.mxu0 0.0
    %191 = vmatpush1.msra.mxu0 0.0
    %192 = vmatprep.subr.mxu0 0.0
    %193 = vmatpush1.msra.mxu0 0.0
    %194 = vmatprep.subr.mxu0 0.0
    %195 = vmatpush1.msra.mxu0 0.0
    %196 = vmatprep.subr.mxu0 0.0
    %197 = vmatpush1.msra.mxu0 0.0
    %198 = vmatprep.subr.mxu0 0.0
    %199 = vmatpush1.msra.mxu0 0.0
    %200 = vmatprep.subr.mxu0 0.0
    %201 = vmatpush1.msra.mxu0 0.0
    %202 = vmatprep.subr.mxu0 0.0
    %203 = vmatpush1.msra.mxu0 0.0
    %204 = vmatprep.subr.mxu0 0.0
    %205 = vmatpush1.msra.mxu0 0.0
    %206 = vmatprep.subr.mxu0 0.0
    %207 = vmatpush1.msra.mxu0 0.0
    %208 = vmatprep.subr.mxu0 0.0
    %209 = vmatpush1.msra.mxu0 0.0
    %210 = vmatprep.subr.mxu0 0.0
    %211 = vmatpush1.msra.mxu0 0.0
    %212 = vmatprep.mubr.f32.mxu0 0.0
    %213 = vmatmul.mubr.f32.gmra.mrb[0].mxu0 %v143
    %v214 = vpop.f32.mrb[0].mxu0
    %v215 = vadd.f32 %v139, %v214
    %v216 = vpop.f32.mrb[0].mxu0
    %217 = vmatprep.mubr.f32.mxu0 0.0
    %218 = vmatmul.mubr.f32.gmra.mrb[0].mxu0 %v146
    %v219 = vpop.f32.mrb[0].mxu0
    %v220 = vadd.f32 %v139, %v219
    %v221 = vpop.f32.mrb[0].mxu0
    %222 = vdwg.mxu0
    %v223 = vmul.f32 %v215, 0.35355338
    %v224 = vmul.f32 %v220, 0.35355338
    %v225 = vld [vmem:[#allocation11] sm:$0xff]
    %v226 = vld [vmem:[#allocation11 + $0x8] sm:$0xff]
    %v227 = vld [vmem:[#allocation11 + $0x10] sm:$0xff]
    %v228 = vld [vmem:[#allocation11 + $0x18] sm:$0xff]
    %v229 = vld [vmem:[%s7] sm:$0x1]
    %v231 = vlaneseq
    %v232 = vshrl.u32 %v231, 7
    %v233 = vsub.s32 0, %v232
    %v234 = vrot.slane %v229, %v233
    %v237 = vsel %vm141, %v126, 0
    %v240 = vsel %vm141, %v127, 0
    %242 = vmatprep.subr.mxu0 0.0
    %243 = vmatpush1.msra.mxu0 %v225
    %244 = vmatprep.subr.mxu0 0.0
    %245 = vmatpush1.msra.mxu0 %v226
    %246 = vmatprep.subr.mxu0 0.0
    %247 = vmatpush1.msra.mxu0 %v227
    %248 = vmatprep.subr.mxu0 0.0
    %249 = vmatpush1.msra.mxu0 %v228
    %250 = vmatprep.subr.mxu0 0.0
    %251 = vmatpush1.msra.mxu0 0.0
    %252 = vmatprep.subr.mxu0 0.0
    %253 = vmatpush1.msra.mxu0 0.0
    %254 = vmatprep.subr.mxu0 0.0
    %255 = vmatpush1.msra.mxu0 0.0
    %256 = vmatprep.subr.mxu0 0.0
    %257 = vmatpush1.msra.mxu0 0.0
    %258 = vmatprep.subr.mxu0 0.0
    %259 = vmatpush1.msra.mxu0 0.0
    %260 = vmatprep.subr.mxu0 0.0
    %261 = vmatpush1.msra.mxu0 0.0
    %262 = vmatprep.subr.mxu0 0.0
    %263 = vmatpush1.msra.mxu0 0.0
    %264 = vmatprep.subr.mxu0 0.0
    %265 = vmatpush1.msra.mxu0 0.0
    %266 = vmatprep.subr.mxu0 0.0
    %267 = vmatpush1.msra.mxu0 0.0
    %268 = vmatprep.subr.mxu0 0.0
    %269 = vmatpush1.msra.mxu0 0.0
    %270 = vmatprep.subr.mxu0 0.0
    %271 = vmatpush1.msra.mxu0 0.0
    %272 = vmatprep.subr.mxu0 0.0
    %273 = vmatpush1.msra.mxu0 0.0
    %274 = vmatprep.subr.mxu0 0.0
    %275 = vmatpush1.msra.mxu0 0.0
    %276 = vmatprep.subr.mxu0 0.0
    %277 = vmatpush1.msra.mxu0 0.0
    %278 = vmatprep.subr.mxu0 0.0
    %279 = vmatpush1.msra.mxu0 0.0
    %280 = vmatprep.subr.mxu0 0.0
    %281 = vmatpush1.msra.mxu0 0.0
    %282 = vmatprep.subr.mxu0 0.0
    %283 = vmatpush1.msra.mxu0 0.0
    %284 = vmatprep.subr.mxu0 0.0
    %285 = vmatpush1.msra.mxu0 0.0
    %286 = vmatprep.subr.mxu0 0.0
    %287 = vmatpush1.msra.mxu0 0.0
    %288 = vmatprep.subr.mxu0 0.0
    %289 = vmatpush1.msra.mxu0 0.0
    %290 = vmatprep.subr.mxu0 0.0
    %291 = vmatpush1.msra.mxu0 0.0
    %292 = vmatprep.subr.mxu0 0.0
    %293 = vmatpush1.msra.mxu0 0.0
    %294 = vmatprep.subr.mxu0 0.0
    %295 = vmatpush1.msra.mxu0 0.0
    %296 = vmatprep.subr.mxu0 0.0
    %297 = vmatpush1.msra.mxu0 0.0
    %298 = vmatprep.subr.mxu0 0.0
    %299 = vmatpush1.msra.mxu0 0.0
    %300 = vmatprep.subr.mxu0 0.0
    %301 = vmatpush1.msra.mxu0 0.0
    %302 = vmatprep.subr.mxu0 0.0
    %303 = vmatpush1.msra.mxu0 0.0
    %304 = vmatprep.subr.mxu0 0.0
    %305 = vmatpush1.msra.mxu0 0.0
    %306 = vmatprep.mubr.f32.mxu0 0.0
    %307 = vmatmul.mubr.f32.gmra.mrb[0].mxu0 %v237
    %v308 = vpop.f32.mrb[0].mxu0
    %v309 = vadd.f32 %v234, %v308
    %v310 = vpop.f32.mrb[0].mxu0
    %311 = vmatprep.mubr.f32.mxu0 0.0
    %312 = vmatmul.mubr.f32.gmra.mrb[0].mxu0 %v240
    %v313 = vpop.f32.mrb[0].mxu0
    %v314 = vadd.f32 %v234, %v313
    %v315 = vpop.f32.mrb[0].mxu0
    %316 = vdwg.mxu0
    %v317 = vld [vmem:[#allocation12] sm:$0xff]
    %v318 = vld [vmem:[#allocation12 + $0x8] sm:$0xff]
    %v319 = vld [vmem:[#allocation12 + $0x10] sm:$0xff]
    %v320 = vld [vmem:[#allocation12 + $0x18] sm:$0xff]
    %v321 = vld [vmem:[%s9] sm:$0x1]
    %v323 = vlaneseq
    %v324 = vshrl.u32 %v323, 7
    %v325 = vsub.s32 0, %v324
    %v326 = vrot.slane %v321, %v325
    %v329 = vsel %vm141, %v128, 0
    %v332 = vsel %vm141, %v129, 0
    %334 = vmatprep.subr.mxu0 0.0
    %335 = vmatpush1.msra.mxu0 %v317
    %336 = vmatprep.subr.mxu0 0.0
    %337 = vmatpush1.msra.mxu0 %v318
    %338 = vmatprep.subr.mxu0 0.0
    %339 = vmatpush1.msra.mxu0 %v319
    %340 = vmatprep.subr.mxu0 0.0
    %341 = vmatpush1.msra.mxu0 %v320
    %342 = vmatprep.subr.mxu0 0.0
    %343 = vmatpush1.msra.mxu0 0.0
    %344 = vmatprep.subr.mxu0 0.0
    %345 = vmatpush1.msra.mxu0 0.0
    %346 = vmatprep.subr.mxu0 0.0
    %347 = vmatpush1.msra.mxu0 0.0
    %348 = vmatprep.subr.mxu0 0.0
    %349 = vmatpush1.msra.mxu0 0.0
    %350 = vmatprep.subr.mxu0 0.0
    %351 = vmatpush1.msra.mxu0 0.0
    %352 = vmatprep.subr.mxu0 0.0
    %353 = vmatpush1.msra.mxu0 0.0
    %354 = vmatprep.subr.mxu0 0.0
    %355 = vmatpush1.msra.mxu0 0.0
    %356 = vmatprep.subr.mxu0 0.0
    %357 = vmatpush1.msra.mxu0 0.0
    %358 = vmatprep.subr.mxu0 0.0
    %359 = vmatpush1.msra.mxu0 0.0
    %360 = vmatprep.subr.mxu0 0.0
    %361 = vmatpush1.msra.mxu0 0.0
    %362 = vmatprep.subr.mxu0 0.0
    %363 = vmatpush1.msra.mxu0 0.0
    %364 = vmatprep.subr.mxu0 0.0
    %365 = vmatpush1.msra.mxu0 0.0
    %366 = vmatprep.subr.mxu0 0.0
    %367 = vmatpush1.msra.mxu0 0.0
    %368 = vmatprep.subr.mxu0 0.0
    %369 = vmatpush1.msra.mxu0 0.0
    %370 = vmatprep.subr.mxu0 0.0
    %371 = vmatpush1.msra.mxu0 0.0
    %372 = vmatprep.subr.mxu0 0.0
    %373 = vmatpush1.msra.mxu0 0.0
    %374 = vmatprep.subr.mxu0 0.0
    %375 = vmatpush1.msra.mxu0 0.0
    %376 = vmatprep.subr.mxu0 0.0
    %377 = vmatpush1.msra.mxu0 0.0
    %378 = vmatprep.subr.mxu0 0.0
    %379 = vmatpush1.msra.mxu0 0.0
    %380 = vmatprep.subr.mxu0 0.0
    %381 = vmatpush1.msra.mxu0 0.0
    %382 = vmatprep.subr.mxu0 0.0
    %383 = vmatpush1.msra.mxu0 0.0
    %384 = vmatprep.subr.mxu0 0.0
    %385 = vmatpush1.msra.mxu0 0.0
    %386 = vmatprep.subr.mxu0 0.0
    %387 = vmatpush1.msra.mxu0 0.0
    %388 = vmatprep.subr.mxu0 0.0
    %389 = vmatpush1.msra.mxu0 0.0
    %390 = vmatprep.subr.mxu0 0.0
    %391 = vmatpush1.msra.mxu0 0.0
    %392 = vmatprep.subr.mxu0 0.0
    %393 = vmatpush1.msra.mxu0 0.0
    %394 = vmatprep.subr.mxu0 0.0
    %395 = vmatpush1.msra.mxu0 0.0
    %396 = vmatprep.subr.mxu0 0.0
    %397 = vmatpush1.msra.mxu0 0.0
    %398 = vmatprep.mubr.f32.mxu0 0.0
    %399 = vmatmul.mubr.f32.gmra.mrb[0].mxu0 %v329
    %v400 = vpop.f32.mrb[0].mxu0
    %v401 = vadd.f32 %v326, %v400
    %v402 = vpop.f32.mrb[0].mxu0
    %403 = vmatprep.mubr.f32.mxu0 0.0
    %404 = vmatmul.mubr.f32.gmra.mrb[0].mxu0 %v332
    %v405 = vpop.f32.mrb[0].mxu0
    %v406 = vadd.f32 %v326, %v405
    %v407 = vpop.f32.mrb[0].mxu0
    %408 = vdwg.mxu0
    %v409 = vlaneseq
    %v410 = vshrl.u32 %v409, 7
    %v411 = vlaneseq
    %v412 = vand.u32 %v411, 127
    %vm413 = vcmp.ge.s32.totalorder %v410, %v412
    %v414 = vsel %vm413, 0.0, -1e+30
    %v415 = vld [vmem:[%s3] sm:$0x1]
    %v416 = vld [vmem:[%s3 + $0x1] sm:$0x1]
    %v419 = vlaneseq
    %v420 = vshrl.u32 %v419, 7
    %v421 = vsub.s32 0, %v420
    %v422 = vrot.slane %v415, %v421
    %v423 = vlaneseq
    %v424 = vshrl.u32 %v423, 7
    %v425 = vsub.s32 0, %v424
    %v426 = vrot.slane %v416, %v425
    %v429 = vadd.f32 %v414, %v422
    %v430 = vadd.f32 %v414, %v426
    %vm431 = vcmask 64512
    %v433 = vsel %vm431, %v223, 0
    %v436 = vsel %vm431, %v309, 0
    %438 = vmatprep.subr.mxu0 0.0
    %439 = vmatpush1.xpose.msra.mxu0 %v436
    %440 = vmatprep.subr.mxu0 0.0
    %441 = vmatpush1.xpose.msra.mxu0 0.0
    %442 = vmatprep.subr.mxu0 0.0
    %443 = vmatpush1.xpose.msra.mxu0 0.0
    %444 = vmatprep.subr.mxu0 0.0
    %445 = vmatpush1.xpose.msra.mxu0 0.0
    %446 = vmatprep.subr.mxu0 0.0
    %447 = vmatpush1.xpose.msra.mxu0 0.0
    %448 = vmatprep.subr.mxu0 0.0
    %449 = vmatpush1.xpose.msra.mxu0 0.0
    %450 = vmatprep.subr.mxu0 0.0
    %451 = vmatpush1.xpose.msra.mxu0 0.0
    %452 = vmatprep.subr.mxu0 0.0
    %453 = vmatpush1.xpose.msra.mxu0 0.0
    %454 = vmatprep.subr.mxu0 0.0
    %455 = vmatpush1.xpose.msra.mxu0 0.0
    %456 = vmatprep.subr.mxu0 0.0
    %457 = vmatpush1.xpose.msra.mxu0 0.0
    %458 = vmatprep.subr.mxu0 0.0
    %459 = vmatpush1.xpose.msra.mxu0 0.0
    %460 = vmatprep.subr.mxu0 0.0
    %461 = vmatpush1.xpose.msra.mxu0 0.0
    %462 = vmatprep.subr.mxu0 0.0
    %463 = vmatpush1.xpose.msra.mxu0 0.0
    %464 = vmatprep.subr.mxu0 0.0
    %465 = vmatpush1.xpose.msra.mxu0 0.0
    %466 = vmatprep.subr.mxu0 0.0
    %467 = vmatpush1.xpose.msra.mxu0 0.0
    %468 = vmatprep.subr.mxu0 0.0
    %469 = vmatpush1.xpose.msra.mxu0 0.0
    %470 = vmatprep.subr.mxu0 0.0
    %471 = vmatpush1.xpose.msra.mxu0 0.0
    %472 = vmatprep.subr.mxu0 0.0
    %473 = vmatpush1.xpose.msra.mxu0 0.0
    %474 = vmatprep.subr.mxu0 0.0
    %475 = vmatpush1.xpose.msra.mxu0 0.0
    %476 = vmatprep.subr.mxu0 0.0
    %477 = vmatpush1.xpose.msra.mxu0 0.0
    %478 = vmatprep.subr.mxu0 0.0
    %479 = vmatpush1.xpose.msra.mxu0 0.0
    %480 = vmatprep.subr.mxu0 0.0
    %481 = vmatpush1.xpose.msra.mxu0 0.0
    %482 = vmatprep.subr.mxu0 0.0
    %483 = vmatpush1.xpose.msra.mxu0 0.0
    %484 = vmatprep.subr.mxu0 0.0
    %485 = vmatpush1.xpose.msra.mxu0 0.0
    %486 = vmatprep.subr.mxu0 0.0
    %487 = vmatpush1.xpose.msra.mxu0 0.0
    %488 = vmatprep.subr.mxu0 0.0
    %489 = vmatpush1.xpose.msra.mxu0 0.0
    %490 = vmatprep.subr.mxu0 0.0
    %491 = vmatpush1.xpose.msra.mxu0 0.0
    %492 = vmatprep.subr.mxu0 0.0
    %493 = vmatpush1.xpose.msra.mxu0 0.0
    %494 = vmatprep.subr.mxu0 0.0
    %495 = vmatpush1.xpose.msra.mxu0 0.0
    %496 = vmatprep.subr.mxu0 0.0
    %497 = vmatpush1.xpose.msra.mxu0 0.0
    %498 = vmatprep.subr.mxu0 0.0
    %499 = vmatpush1.xpose.msra.mxu0 0.0
    %500 = vmatprep.subr.mxu0 0.0
    %501 = vmatpush1.xpose.msra.mxu0 0.0
    %502 = vmatprep.mubr.f32.mxu0 0.0
    %503 = vmatmul.mubr.f32.gmra.mrb[0].mxu0 %v433
    %v504 = vpop.f32.mrb[0].mxu0
    %v505 = vadd.f32 %v429, %v504
    %v506 = vpop.f32.mrb[0].mxu0
    %507 = vdwg.mxu0
    %v509 = vsel %vm431, %v224, 0
    %v512 = vsel %vm431, %v314, 0
    %514 = vmatprep.subr.mxu0 0.0
    %515 = vmatpush1.xpose.msra.mxu0 %v512
    %516 = vmatprep.subr.mxu0 0.0
    %517 = vmatpush1.xpose.msra.mxu0 0.0
    %518 = vmatprep.subr.mxu0 0.0
    %519 = vmatpush1.xpose.msra.mxu0 0.0
    %520 = vmatprep.subr.mxu0 0.0
    %521 = vmatpush1.xpose.msra.mxu0 0.0
    %522 = vmatprep.subr.mxu0 0.0
    %523 = vmatpush1.xpose.msra.mxu0 0.0
    %524 = vmatprep.subr.mxu0 0.0
    %525 = vmatpush1.xpose.msra.mxu0 0.0
    %526 = vmatprep.subr.mxu0 0.0
    %527 = vmatpush1.xpose.msra.mxu0 0.0
    %528 = vmatprep.subr.mxu0 0.0
    %529 = vmatpush1.xpose.msra.mxu0 0.0
    %530 = vmatprep.subr.mxu0 0.0
    %531 = vmatpush1.xpose.msra.mxu0 0.0
    %532 = vmatprep.subr.mxu0 0.0
    %533 = vmatpush1.xpose.msra.mxu0 0.0
    %534 = vmatprep.subr.mxu0 0.0
    %535 = vmatpush1.xpose.msra.mxu0 0.0
    %536 = vmatprep.subr.mxu0 0.0
    %537 = vmatpush1.xpose.msra.mxu0 0.0
    %538 = vmatprep.subr.mxu0 0.0
    %539 = vmatpush1.xpose.msra.mxu0 0.0
    %540 = vmatprep.subr.mxu0 0.0
    %541 = vmatpush1.xpose.msra.mxu0 0.0
    %542 = vmatprep.subr.mxu0 0.0
    %543 = vmatpush1.xpose.msra.mxu0 0.0
    %544 = vmatprep.subr.mxu0 0.0
    %545 = vmatpush1.xpose.msra.mxu0 0.0
    %546 = vmatprep.subr.mxu0 0.0
    %547 = vmatpush1.xpose.msra.mxu0 0.0
    %548 = vmatprep.subr.mxu0 0.0
    %549 = vmatpush1.xpose.msra.mxu0 0.0
    %550 = vmatprep.subr.mxu0 0.0
    %551 = vmatpush1.xpose.msra.mxu0 0.0
    %552 = vmatprep.subr.mxu0 0.0
    %553 = vmatpush1.xpose.msra.mxu0 0.0
    %554 = vmatprep.subr.mxu0 0.0
    %555 = vmatpush1.xpose.msra.mxu0 0.0
    %556 = vmatprep.subr.mxu0 0.0
    %557 = vmatpush1.xpose.msra.mxu0 0.0
    %558 = vmatprep.subr.mxu0 0.0
    %559 = vmatpush1.xpose.msra.mxu0 0.0
    %560 = vmatprep.subr.mxu0 0.0
    %561 = vmatpush1.xpose.msra.mxu0 0.0
    %562 = vmatprep.subr.mxu0 0.0
    %563 = vmatpush1.xpose.msra.mxu0 0.0
    %564 = vmatprep.subr.mxu0 0.0
    %565 = vmatpush1.xpose.msra.mxu0 0.0
    %566 = vmatprep.subr.mxu0 0.0
    %567 = vmatpush1.xpose.msra.mxu0 0.0
    %568 = vmatprep.subr.mxu0 0.0
    %569 = vmatpush1.xpose.msra.mxu0 0.0
    %570 = vmatprep.subr.mxu0 0.0
    %571 = vmatpush1.xpose.msra.mxu0 0.0
    %572 = vmatprep.subr.mxu0 0.0
    %573 = vmatpush1.xpose.msra.mxu0 0.0
    %574 = vmatprep.subr.mxu0 0.0
    %575 = vmatpush1.xpose.msra.mxu0 0.0
    %576 = vmatprep.subr.mxu0 0.0
    %577 = vmatpush1.xpose.msra.mxu0 0.0
    %578 = vmatprep.mubr.f32.mxu0 0.0
    %579 = vmatmul.mubr.f32.gmra.mrb[0].mxu0 %v509
    %v580 = vpop.f32.mrb[0].mxu0
    %v581 = vadd.f32 %v430, %v580
    %v582 = vpop.f32.mrb[0].mxu0
    %583 = vdwg.mxu0
    %v584 = vsel %vm431, %v505, -inf
    %585 = vmax.xlane.f32.xlu0 %v584
    %v586 = vpop.xlane.xlu0 %585
    %v587 = vsel %vm431, %v581, -inf
    %588 = vmax.xlane.f32.xlu0 %v587
    %v589 = vpop.xlane.xlu0 %588
    %v590 = vsub.f32 %v505, %v586
    %v591 = vsub.f32 %v581, %v589
    %v592 = vmul.f32 %v590, 1.442695
    %v593 = vpow.pop %v592
    %v594 = vmul.f32 %v591, 1.442695
    %v595 = vpow.pop %v594
    %v596 = vsel %vm431, %v593, 0.0
    %597 = vadd.xlane.f32.xlu0 %v596
    %v598 = vpop.xlane.xlu0 %597
    %v599 = vsel %vm431, %v595, 0.0
    %600 = vadd.xlane.f32.xlu0 %v599
    %v601 = vpop.xlane.xlu0 %600
    %v602 = vrcp.pop %v598
    %v603 = vrcp.pop %v601
    %v604 = vmul.f32 %v593, %v602
    %v605 = vmul.f32 %v595, %v603
    %v607 = vsel %vm431, %v604, 0
    %609 = vmatprep.subr.mxu0 0.0
    %610 = vmatpush1.msra.mxu0 %v401
    %611 = vmatprep.subr.mxu0 0.0
    %612 = vmatpush1.msra.mxu0 0.0
    %613 = vmatprep.subr.mxu0 0.0
    %614 = vmatpush1.msra.mxu0 0.0
    %615 = vmatprep.subr.mxu0 0.0
    %616 = vmatpush1.msra.mxu0 0.0
    %617 = vmatprep.subr.mxu0 0.0
    %618 = vmatpush1.msra.mxu0 0.0
    %619 = vmatprep.subr.mxu0 0.0
    %620 = vmatpush1.msra.mxu0 0.0
    %621 = vmatprep.subr.mxu0 0.0
    %622 = vmatpush1.msra.mxu0 0.0
    %623 = vmatprep.subr.mxu0 0.0
    %624 = vmatpush1.msra.mxu0 0.0
    %625 = vmatprep.subr.mxu0 0.0
    %626 = vmatpush1.msra.mxu0 0.0
    %627 = vmatprep.subr.mxu0 0.0
    %628 = vmatpush1.msra.mxu0 0.0
    %629 = vmatprep.subr.mxu0 0.0
    %630 = vmatpush1.msra.mxu0 0.0
    %631 = vmatprep.subr.mxu0 0.0
    %632 = vmatpush1.msra.mxu0 0.0
    %633 = vmatprep.subr.mxu0 0.0
    %634 = vmatpush1.msra.mxu0 0.0
    %635 = vmatprep.subr.mxu0 0.0
    %636 = vmatpush1.msra.mxu0 0.0
    %637 = vmatprep.subr.mxu0 0.0
    %638 = vmatpush1.msra.mxu0 0.0
    %639 = vmatprep.subr.mxu0 0.0
    %640 = vmatpush1.msra.mxu0 0.0
    %641 = vmatprep.subr.mxu0 0.0
    %642 = vmatpush1.msra.mxu0 0.0
    %643 = vmatprep.subr.mxu0 0.0
    %644 = vmatpush1.msra.mxu0 0.0
    %645 = vmatprep.subr.mxu0 0.0
    %646 = vmatpush1.msra.mxu0 0.0
    %647 = vmatprep.subr.mxu0 0.0
    %648 = vmatpush1.msra.mxu0 0.0
    %649 = vmatprep.subr.mxu0 0.0
    %650 = vmatpush1.msra.mxu0 0.0
    %651 = vmatprep.subr.mxu0 0.0
    %652 = vmatpush1.msra.mxu0 0.0
    %653 = vmatprep.subr.mxu0 0.0
    %654 = vmatpush1.msra.mxu0 0.0
    %655 = vmatprep.subr.mxu0 0.0
    %656 = vmatpush1.msra.mxu0 0.0
    %657 = vmatprep.subr.mxu0 0.0
    %658 = vmatpush1.msra.mxu0 0.0
    %659 = vmatprep.subr.mxu0 0.0
    %660 = vmatpush1.msra.mxu0 0.0
    %661 = vmatprep.subr.mxu0 0.0
    %662 = vmatpush1.msra.mxu0 0.0
    %663 = vmatprep.subr.mxu0 0.0
    %664 = vmatpush1.msra.mxu0 0.0
    %665 = vmatprep.subr.mxu0 0.0
    %666 = vmatpush1.msra.mxu0 0.0
    %667 = vmatprep.subr.mxu0 0.0
    %668 = vmatpush1.msra.mxu0 0.0
    %669 = vmatprep.subr.mxu0 0.0
    %670 = vmatpush1.msra.mxu0 0.0
    %671 = vmatprep.subr.mxu0 0.0
    %672 = vmatpush1.msra.mxu0 0.0
    %673 = vmatprep.mubr.f32.mxu0 0.0
    %674 = vmatmul.mubr.f32.gmra.mrb[0].mxu0 %v607
    %v675 = vpop.f32.mrb[0].mxu0
    %v676 = vadd.f32 0.0, %v675
    %v677 = vpop.f32.mrb[0].mxu0
    %678 = vdwg.mxu0
    %v680 = vsel %vm431, %v605, 0
    %682 = vmatprep.subr.mxu0 0.0
    %683 = vmatpush1.msra.mxu0 %v406
    %684 = vmatprep.subr.mxu0 0.0
    %685 = vmatpush1.msra.mxu0 0.0
    %686 = vmatprep.subr.mxu0 0.0
    %687 = vmatpush1.msra.mxu0 0.0
    %688 = vmatprep.subr.mxu0 0.0
    %689 = vmatpush1.msra.mxu0 0.0
    %690 = vmatprep.subr.mxu0 0.0
    %691 = vmatpush1.msra.mxu0 0.0
    %692 = vmatprep.subr.mxu0 0.0
    %693 = vmatpush1.msra.mxu0 0.0
    %694 = vmatprep.subr.mxu0 0.0
    %695 = vmatpush1.msra.mxu0 0.0
    %696 = vmatprep.subr.mxu0 0.0
    %697 = vmatpush1.msra.mxu0 0.0
    %698 = vmatprep.subr.mxu0 0.0
    %699 = vmatpush1.msra.mxu0 0.0
    %700 = vmatprep.subr.mxu0 0.0
    %701 = vmatpush1.msra.mxu0 0.0
    %702 = vmatprep.subr.mxu0 0.0
    %703 = vmatpush1.msra.mxu0 0.0
    %704 = vmatprep.subr.mxu0 0.0
    %705 = vmatpush1.msra.mxu0 0.0
    %706 = vmatprep.subr.mxu0 0.0
    %707 = vmatpush1.msra.mxu0 0.0
    %708 = vmatprep.subr.mxu0 0.0
    %709 = vmatpush1.msra.mxu0 0.0
    %710 = vmatprep.subr.mxu0 0.0
    %711 = vmatpush1.msra.mxu0 0.0
    %712 = vmatprep.subr.mxu0 0.0
    %713 = vmatpush1.msra.mxu0 0.0
    %714 = vmatprep.subr.mxu0 0.0
    %715 = vmatpush1.msra.mxu0 0.0
    %716 = vmatprep.subr.mxu0 0.0
    %717 = vmatpush1.msra.mxu0 0.0
    %718 = vmatprep.subr.mxu0 0.0
    %719 = vmatpush1.msra.mxu0 0.0
    %720 = vmatprep.subr.mxu0 0.0
    %721 = vmatpush1.msra.mxu0 0.0
    %722 = vmatprep.subr.mxu0 0.0
    %723 = vmatpush1.msra.mxu0 0.0
    %724 = vmatprep.subr.mxu0 0.0
    %725 = vmatpush1.msra.mxu0 0.0
    %726 = vmatprep.subr.mxu0 0.0
    %727 = vmatpush1.msra.mxu0 0.0
    %728 = vmatprep.subr.mxu0 0.0
    %729 = vmatpush1.msra.mxu0 0.0
    %730 = vmatprep.subr.mxu0 0.0
    %731 = vmatpush1.msra.mxu0 0.0
    %732 = vmatprep.subr.mxu0 0.0
    %733 = vmatpush1.msra.mxu0 0.0
    %734 = vmatprep.subr.mxu0 0.0
    %735 = vmatpush1.msra.mxu0 0.0
    %736 = vmatprep.subr.mxu0 0.0
    %737 = vmatpush1.msra.mxu0 0.0
    %738 = vmatprep.subr.mxu0 0.0
    %739 = vmatpush1.msra.mxu0 0.0
    %740 = vmatprep.subr.mxu0 0.0
    %741 = vmatpush1.msra.mxu0 0.0
    %742 = vmatprep.subr.mxu0 0.0
    %743 = vmatpush1.msra.mxu0 0.0
    %744 = vmatprep.subr.mxu0 0.0
    %745 = vmatpush1.msra.mxu0 0.0
    %746 = vmatprep.mubr.f32.mxu0 0.0
    %747 = vmatmul.mubr.f32.gmra.mrb[0].mxu0 %v680
    %v748 = vpop.f32.mrb[0].mxu0
    %v749 = vadd.f32 0.0, %v748
    %v750 = vpop.f32.mrb[0].mxu0
    %751 = vdwg.mxu0
    %752 = vst.msk [vmem:[#allocation2] sm:$0xff] %vm431, %v676
    %753 = vst.msk [vmem:[#allocation2 + $0x8] sm:$0xff] %vm431, %v749
    %754 = vrot.lane.b32.xlu0 %v223, 120
    %v755 = vpop.permute.xlu0 %754
    %756 = vrot.lane.b32.xlu0 %v309, 120
    %v757 = vpop.permute.xlu0 %756
    %v758 = vsel %vm431, %v755, 0
    %v760 = vsel %vm431, %v757, 0
    %762 = vmatprep.subr.mxu0 0.0
    %763 = vmatpush1.xpose.msra.mxu0 %v760
    %764 = vmatprep.subr.mxu0 0.0
    %765 = vmatpush1.xpose.msra.mxu0 0.0
    %766 = vmatprep.subr.mxu0 0.0
    %767 = vmatpush1.xpose.msra.mxu0 0.0
    %768 = vmatprep.subr.mxu0 0.0
    %769 = vmatpush1.xpose.msra.mxu0 0.0
    %770 = vmatprep.subr.mxu0 0.0
    %771 = vmatpush1.xpose.msra.mxu0 0.0
    %772 = vmatprep.subr.mxu0 0.0
    %773 = vmatpush1.xpose.msra.mxu0 0.0
    %774 = vmatprep.subr.mxu0 0.0
    %775 = vmatpush1.xpose.msra.mxu0 0.0
    %776 = vmatprep.subr.mxu0 0.0
    %777 = vmatpush1.xpose.msra.mxu0 0.0
    %778 = vmatprep.subr.mxu0 0.0
    %779 = vmatpush1.xpose.msra.mxu0 0.0
    %780 = vmatprep.subr.mxu0 0.0
    %781 = vmatpush1.xpose.msra.mxu0 0.0
    %782 = vmatprep.subr.mxu0 0.0
    %783 = vmatpush1.xpose.msra.mxu0 0.0
    %784 = vmatprep.subr.mxu0 0.0
    %785 = vmatpush1.xpose.msra.mxu0 0.0
    %786 = vmatprep.subr.mxu0 0.0
    %787 = vmatpush1.xpose.msra.mxu0 0.0
    %788 = vmatprep.subr.mxu0 0.0
    %789 = vmatpush1.xpose.msra.mxu0 0.0
    %790 = vmatprep.subr.mxu0 0.0
    %791 = vmatpush1.xpose.msra.mxu0 0.0
    %792 = vmatprep.subr.mxu0 0.0
    %793 = vmatpush1.xpose.msra.mxu0 0.0
    %794 = vmatprep.subr.mxu0 0.0
    %795 = vmatpush1.xpose.msra.mxu0 0.0
    %796 = vmatprep.subr.mxu0 0.0
    %797 = vmatpush1.xpose.msra.mxu0 0.0
    %798 = vmatprep.subr.mxu0 0.0
    %799 = vmatpush1.xpose.msra.mxu0 0.0
    %800 = vmatprep.subr.mxu0 0.0
    %801 = vmatpush1.xpose.msra.mxu0 0.0
    %802 = vmatprep.subr.mxu0 0.0
    %803 = vmatpush1.xpose.msra.mxu0 0.0
    %804 = vmatprep.subr.mxu0 0.0
    %805 = vmatpush1.xpose.msra.mxu0 0.0
    %806 = vmatprep.subr.mxu0 0.0
    %807 = vmatpush1.xpose.msra.mxu0 0.0
    %808 = vmatprep.subr.mxu0 0.0
    %809 = vmatpush1.xpose.msra.mxu0 0.0
    %810 = vmatprep.subr.mxu0 0.0
    %811 = vmatpush1.xpose.msra.mxu0 0.0
    %812 = vmatprep.subr.mxu0 0.0
    %813 = vmatpush1.xpose.msra.mxu0 0.0
    %814 = vmatprep.subr.mxu0 0.0
    %815 = vmatpush1.xpose.msra.mxu0 0.0
    %816 = vmatprep.subr.mxu0 0.0
    %817 = vmatpush1.xpose.msra.mxu0 0.0
    %818 = vmatprep.subr.mxu0 0.0
    %819 = vmatpush1.xpose.msra.mxu0 0.0
    %820 = vmatprep.subr.mxu0 0.0
    %821 = vmatpush1.xpose.msra.mxu0 0.0
    %822 = vmatprep.subr.mxu0 0.0
    %823 = vmatpush1.xpose.msra.mxu0 0.0
    %824 = vmatprep.subr.mxu0 0.0
    %825 = vmatpush1.xpose.msra.mxu0 0.0
    %826 = vmatprep.mubr.f32.mxu0 0.0
    %827 = vmatmul.mubr.f32.gmra.mrb[0].mxu0 %v758
    %v828 = vpop.f32.mrb[0].mxu0
    %v829 = vadd.f32 %v429, %v828
    %v830 = vpop.f32.mrb[0].mxu0
    %831 = vdwg.mxu0
    %832 = vrot.lane.b32.xlu0 %v224, 120
    %v833 = vpop.permute.xlu0 %832
    %834 = vrot.lane.b32.xlu0 %v314, 120
    %v835 = vpop.permute.xlu0 %834
    %v836 = vsel %vm431, %v833, 0
    %v838 = vsel %vm431, %v835, 0
    %840 = vmatprep.subr.mxu0 0.0
    %841 = vmatpush1.xpose.msra.mxu0 %v838
    %842 = vmatprep.subr.mxu0 0.0
    %843 = vmatpush1.xpose.msra.mxu0 0.0
    %844 = vmatprep.subr.mxu0 0.0
    %845 = vmatpush1.xpose.msra.mxu0 0.0
    %846 = vmatprep.subr.mxu0 0.0
    %847 = vmatpush1.xpose.msra.mxu0 0.0
    %848 = vmatprep.subr.mxu0 0.0
    %849 = vmatpush1.xpose.msra.mxu0 0.0
    %850 = vmatprep.subr.mxu0 0.0
    %851 = vmatpush1.xpose.msra.mxu0 0.0
    %852 = vmatprep.subr.mxu0 0.0
    %853 = vmatpush1.xpose.msra.mxu0 0.0
    %854 = vmatprep.subr.mxu0 0.0
    %855 = vmatpush1.xpose.msra.mxu0 0.0
    %856 = vmatprep.subr.mxu0 0.0
    %857 = vmatpush1.xpose.msra.mxu0 0.0
    %858 = vmatprep.subr.mxu0 0.0
    %859 = vmatpush1.xpose.msra.mxu0 0.0
    %860 = vmatprep.subr.mxu0 0.0
    %861 = vmatpush1.xpose.msra.mxu0 0.0
    %862 = vmatprep.subr.mxu0 0.0
    %863 = vmatpush1.xpose.msra.mxu0 0.0
    %864 = vmatprep.subr.mxu0 0.0
    %865 = vmatpush1.xpose.msra.mxu0 0.0
    %866 = vmatprep.subr.mxu0 0.0
    %867 = vmatpush1.xpose.msra.mxu0 0.0
    %868 = vmatprep.subr.mxu0 0.0
    %869 = vmatpush1.xpose.msra.mxu0 0.0
    %870 = vmatprep.subr.mxu0 0.0
    %871 = vmatpush1.xpose.msra.mxu0 0.0
    %872 = vmatprep.subr.mxu0 0.0
    %873 = vmatpush1.xpose.msra.mxu0 0.0
    %874 = vmatprep.subr.mxu0 0.0
    %875 = vmatpush1.xpose.msra.mxu0 0.0
    %876 = vmatprep.subr.mxu0 0.0
    %877 = vmatpush1.xpose.msra.mxu0 0.0
    %878 = vmatprep.subr.mxu0 0.0
    %879 = vmatpush1.xpose.msra.mxu0 0.0
    %880 = vmatprep.subr.mxu0 0.0
    %881 = vmatpush1.xpose.msra.mxu0 0.0
    %882 = vmatprep.subr.mxu0 0.0
    %883 = vmatpush1.xpose.msra.mxu0 0.0
    %884 = vmatprep.subr.mxu0 0.0
    %885 = vmatpush1.xpose.msra.mxu0 0.0
    %886 = vmatprep.subr.mxu0 0.0
    %887 = vmatpush1.xpose.msra.mxu0 0.0
    %888 = vmatprep.subr.mxu0 0.0
    %889 = vmatpush1.xpose.msra.mxu0 0.0
    %890 = vmatprep.subr.mxu0 0.0
    %891 = vmatpush1.xpose.msra.mxu0 0.0
    %892 = vmatprep.subr.mxu0 0.0
    %893 = vmatpush1.xpose.msra.mxu0 0.0
    %894 = vmatprep.subr.mxu0 0.0
    %895 = vmatpush1.xpose.msra.mxu0 0.0
    %896 = vmatprep.subr.mxu0 0.0
    %897 = vmatpush1.xpose.msra.mxu0 0.0
    %898 = vmatprep.subr.mxu0 0.0
    %899 = vmatpush1.xpose.msra.mxu0 0.0
    %900 = vmatprep.subr.mxu0 0.0
    %901 = vmatpush1.xpose.msra.mxu0 0.0
    %902 = vmatprep.subr.mxu0 0.0
    %903 = vmatpush1.xpose.msra.mxu0 0.0
    %904 = vmatprep.mubr.f32.mxu0 0.0
    %905 = vmatmul.mubr.f32.gmra.mrb[0].mxu0 %v836
    %v906 = vpop.f32.mrb[0].mxu0
    %v907 = vadd.f32 %v430, %v906
    %v908 = vpop.f32.mrb[0].mxu0
    %909 = vdwg.mxu0
    %v910 = vsel %vm431, %v829, -inf
    %911 = vmax.xlane.f32.xlu0 %v910
    %v912 = vpop.xlane.xlu0 %911
    %v913 = vsel %vm431, %v907, -inf
    %914 = vmax.xlane.f32.xlu0 %v913
    %v915 = vpop.xlane.xlu0 %914
    %v916 = vsub.f32 %v829, %v912
    %v917 = vsub.f32 %v907, %v915
    %v918 = vmul.f32 %v916, 1.442695
    %v919 = vpow.pop %v918
    %v920 = vmul.f32 %v917, 1.442695
    %v921 = vpow.pop %v920
    %v922 = vsel %vm431, %v919, 0.0
    %923 = vadd.xlane.f32.xlu0 %v922
    %v924 = vpop.xlane.xlu0 %923
    %v925 = vsel %vm431, %v921, 0.0
    %926 = vadd.xlane.f32.xlu0 %v925
    %v927 = vpop.xlane.xlu0 %926
    %v928 = vrcp.pop %v924
    %v929 = vrcp.pop %v927
    %v930 = vmul.f32 %v919, %v928
    %v931 = vmul.f32 %v921, %v929
    %933 = vrot.lane.b32.xlu0 %v401, 120
    %v934 = vpop.permute.xlu0 %933
    %v937 = vsel %vm431, %v930, 0
    %939 = vmatprep.subr.mxu0 0.0
    %940 = vmatpush1.msra.mxu0 %v934
    %941 = vmatprep.subr.mxu0 0.0
    %942 = vmatpush1.msra.mxu0 0.0
    %943 = vmatprep.subr.mxu0 0.0
    %944 = vmatpush1.msra.mxu0 0.0
    %945 = vmatprep.subr.mxu0 0.0
    %946 = vmatpush1.msra.mxu0 0.0
    %947 = vmatprep.subr.mxu0 0.0
    %948 = vmatpush1.msra.mxu0 0.0
    %949 = vmatprep.subr.mxu0 0.0
    %950 = vmatpush1.msra.mxu0 0.0
    %951 = vmatprep.subr.mxu0 0.0
    %952 = vmatpush1.msra.mxu0 0.0
    %953 = vmatprep.subr.mxu0 0.0
    %954 = vmatpush1.msra.mxu0 0.0
    %955 = vmatprep.subr.mxu0 0.0
    %956 = vmatpush1.msra.mxu0 0.0
    %957 = vmatprep.subr.mxu0 0.0
    %958 = vmatpush1.msra.mxu0 0.0
    %959 = vmatprep.subr.mxu0 0.0
    %960 = vmatpush1.msra.mxu0 0.0
    %961 = vmatprep.subr.mxu0 0.0
    %962 = vmatpush1.msra.mxu0 0.0
    %963 = vmatprep.subr.mxu0 0.0
    %964 = vmatpush1.msra.mxu0 0.0
    %965 = vmatprep.subr.mxu0 0.0
    %966 = vmatpush1.msra.mxu0 0.0
    %967 = vmatprep.subr.mxu0 0.0
    %968 = vmatpush1.msra.mxu0 0.0
    %969 = vmatprep.subr.mxu0 0.0
    %970 = vmatpush1.msra.mxu0 0.0
    %971 = vmatprep.subr.mxu0 0.0
    %972 = vmatpush1.msra.mxu0 0.0
    %973 = vmatprep.subr.mxu0 0.0
    %974 = vmatpush1.msra.mxu0 0.0
    %975 = vmatprep.subr.mxu0 0.0
    %976 = vmatpush1.msra.mxu0 0.0
    %977 = vmatprep.subr.mxu0 0.0
    %978 = vmatpush1.msra.mxu0 0.0
    %979 = vmatprep.subr.mxu0 0.0
    %980 = vmatpush1.msra.mxu0 0.0
    %981 = vmatprep.subr.mxu0 0.0
    %982 = vmatpush1.msra.mxu0 0.0
    %983 = vmatprep.subr.mxu0 0.0
    %984 = vmatpush1.msra.mxu0 0.0
    %985 = vmatprep.subr.mxu0 0.0
    %986 = vmatpush1.msra.mxu0 0.0
    %987 = vmatprep.subr.mxu0 0.0
    %988 = vmatpush1.msra.mxu0 0.0
    %989 = vmatprep.subr.mxu0 0.0
    %990 = vmatpush1.msra.mxu0 0.0
    %991 = vmatprep.subr.mxu0 0.0
    %992 = vmatpush1.msra.mxu0 0.0
    %993 = vmatprep.subr.mxu0 0.0
    %994 = vmatpush1.msra.mxu0 0.0
    %995 = vmatprep.subr.mxu0 0.0
    %996 = vmatpush1.msra.mxu0 0.0
    %997 = vmatprep.subr.mxu0 0.0
    %998 = vmatpush1.msra.mxu0 0.0
    %999 = vmatprep.subr.mxu0 0.0
    %1000 = vmatpush1.msra.mxu0 0.0
    %1001 = vmatprep.subr.mxu0 0.0
    %1002 = vmatpush1.msra.mxu0 0.0
    %1003 = vmatprep.mubr.f32.mxu0 0.0
    %1004 = vmatmul.mubr.f32.gmra.mrb[0].mxu0 %v937
    %v1005 = vpop.f32.mrb[0].mxu0
    %v1006 = vadd.f32 0.0, %v1005
    %v1007 = vpop.f32.mrb[0].mxu0
    %1008 = vdwg.mxu0
    %1010 = vrot.lane.b32.xlu0 %v406, 120
    %v1011 = vpop.permute.xlu0 %1010
    %v1014 = vsel %vm431, %v931, 0
    %1016 = vmatprep.subr.mxu0 0.0
    %1017 = vmatpush1.msra.mxu0 %v1011
    %1018 = vmatprep.subr.mxu0 0.0
    %1019 = vmatpush1.msra.mxu0 0.0
    %1020 = vmatprep.subr.mxu0 0.0
    %1021 = vmatpush1.msra.mxu0 0.0
    %1022 = vmatprep.subr.mxu0 0.0
    %1023 = vmatpush1.msra.mxu0 0.0
    %1024 = vmatprep.subr.mxu0 0.0
    %1025 = vmatpush1.msra.mxu0 0.0
    %1026 = vmatprep.subr.mxu0 0.0
    %1027 = vmatpush1.msra.mxu0 0.0
    %1028 = vmatprep.subr.mxu0 0.0
    %1029 = vmatpush1.msra.mxu0 0.0
    %1030 = vmatprep.subr.mxu0 0.0
    %1031 = vmatpush1.msra.mxu0 0.0
    %1032 = vmatprep.subr.mxu0 0.0
    %1033 = vmatpush1.msra.mxu0 0.0
    %1034 = vmatprep.subr.mxu0 0.0
    %1035 = vmatpush1.msra.mxu0 0.0
    %1036 = vmatprep.subr.mxu0 0.0
    %1037 = vmatpush1.msra.mxu0 0.0
    %1038 = vmatprep.subr.mxu0 0.0
    %1039 = vmatpush1.msra.mxu0 0.0
    %1040 = vmatprep.subr.mxu0 0.0
    %1041 = vmatpush1.msra.mxu0 0.0
    %1042 = vmatprep.subr.mxu0 0.0
    %1043 = vmatpush1.msra.mxu0 0.0
    %1044 = vmatprep.subr.mxu0 0.0
    %1045 = vmatpush1.msra.mxu0 0.0
    %1046 = vmatprep.subr.mxu0 0.0
    %1047 = vmatpush1.msra.mxu0 0.0
    %1048 = vmatprep.subr.mxu0 0.0
    %1049 = vmatpush1.msra.mxu0 0.0
    %1050 = vmatprep.subr.mxu0 0.0
    %1051 = vmatpush1.msra.mxu0 0.0
    %1052 = vmatprep.subr.mxu0 0.0
    %1053 = vmatpush1.msra.mxu0 0.0
    %1054 = vmatprep.subr.mxu0 0.0
    %1055 = vmatpush1.msra.mxu0 0.0
    %1056 = vmatprep.subr.mxu0 0.0
    %1057 = vmatpush1.msra.mxu0 0.0
    %1058 = vmatprep.subr.mxu0 0.0
    %1059 = vmatpush1.msra.mxu0 0.0
    %1060 = vmatprep.subr.mxu0 0.0
    %1061 = vmatpush1.msra.mxu0 0.0
    %1062 = vmatprep.subr.mxu0 0.0
    %1063 = vmatpush1.msra.mxu0 0.0
    %1064 = vmatprep.subr.mxu0 0.0
    %1065 = vmatpush1.msra.mxu0 0.0
    %1066 = vmatprep.subr.mxu0 0.0
    %1067 = vmatpush1.msra.mxu0 0.0
    %1068 = vmatprep.subr.mxu0 0.0
    %1069 = vmatpush1.msra.mxu0 0.0
    %1070 = vmatprep.subr.mxu0 0.0
    %1071 = vmatpush1.msra.mxu0 0.0
    %1072 = vmatprep.subr.mxu0 0.0
    %1073 = vmatpush1.msra.mxu0 0.0
    %1074 = vmatprep.subr.mxu0 0.0
    %1075 = vmatpush1.msra.mxu0 0.0
    %1076 = vmatprep.subr.mxu0 0.0
    %1077 = vmatpush1.msra.mxu0 0.0
    %1078 = vmatprep.subr.mxu0 0.0
    %1079 = vmatpush1.msra.mxu0 0.0
    %1080 = vmatprep.mubr.f32.mxu0 0.0
    %1081 = vmatmul.mubr.f32.gmra.mrb[0].mxu0 %v1014
    %v1082 = vpop.f32.mrb[0].mxu0
    %v1083 = vadd.f32 0.0, %v1082
    %v1084 = vpop.f32.mrb[0].mxu0
    %1085 = vdwg.mxu0
    %1088 = vrot.lane.b32.xlu0 %v1006, 8
    %v1089 = vpop.permute.xlu0 %1088
    %1090 = vrot.lane.b32.xlu0 %v1083, 8
    %v1091 = vpop.permute.xlu0 %1090
    %vm1094 = vcmask 130112
    %1095 = vst.msk [vmem:[#allocation2] sm:$0xff] %vm1094, %v1089
    %1096 = vst.msk [vmem:[#allocation2 + $0x8] sm:$0xff] %vm1094, %v1091
    %1097 = vrot.lane.b32.xlu0 %v223, 112
    %v1098 = vpop.permute.xlu0 %1097
    %1099 = vrot.lane.b32.xlu0 %v309, 112
    %v1100 = vpop.permute.xlu0 %1099
    %v1101 = vsel %vm431, %v1098, 0
    %v1103 = vsel %vm431, %v1100, 0
    %1105 = vmatprep.subr.mxu0 0.0
    %1106 = vmatpush1.xpose.msra.mxu0 %v1103
    %1107 = vmatprep.subr.mxu0 0.0
    %1108 = vmatpush1.xpose.msra.mxu0 0.0
    %1109 = vmatprep.subr.mxu0 0.0
    %1110 = vmatpush1.xpose.msra.mxu0 0.0
    %1111 = vmatprep.subr.mxu0 0.0
    %1112 = vmatpush1.xpose.msra.mxu0 0.0
    %1113 = vmatprep.subr.mxu0 0.0
    %1114 = vmatpush1.xpose.msra.mxu0 0.0
    %1115 = vmatprep.subr.mxu0 0.0
    %1116 = vmatpush1.xpose.msra.mxu0 0.0
    %1117 = vmatprep.subr.mxu0 0.0
    %1118 = vmatpush1.xpose.msra.mxu0 0.0
    %1119 = vmatprep.subr.mxu0 0.0
    %1120 = vmatpush1.xpose.msra.mxu0 0.0
    %1121 = vmatprep.subr.mxu0 0.0
    %1122 = vmatpush1.xpose.msra.mxu0 0.0
    %1123 = vmatprep.subr.mxu0 0.0
    %1124 = vmatpush1.xpose.msra.mxu0 0.0
    %1125 = vmatprep.subr.mxu0 0.0
    %1126 = vmatpush1.xpose.msra.mxu0 0.0
    %1127 = vmatprep.subr.mxu0 0.0
    %1128 = vmatpush1.xpose.msra.mxu0 0.0
    %1129 = vmatprep.subr.mxu0 0.0
    %1130 = vmatpush1.xpose.msra.mxu0 0.0
    %1131 = vmatprep.subr.mxu0 0.0
    %1132 = vmatpush1.xpose.msra.mxu0 0.0
    %1133 = vmatprep.subr.mxu0 0.0
    %1134 = vmatpush1.xpose.msra.mxu0 0.0
    %1135 = vmatprep.subr.mxu0 0.0
    %1136 = vmatpush1.xpose.msra.mxu0 0.0
    %1137 = vmatprep.subr.mxu0 0.0
    %1138 = vmatpush1.xpose.msra.mxu0 0.0
    %1139 = vmatprep.subr.mxu0 0.0
    %1140 = vmatpush1.xpose.msra.mxu0 0.0
    %1141 = vmatprep.subr.mxu0 0.0
    %1142 = vmatpush1.xpose.msra.mxu0 0.0
    %1143 = vmatprep.subr.mxu0 0.0
    %1144 = vmatpush1.xpose.msra.mxu0 0.0
    %1145 = vmatprep.subr.mxu0 0.0
    %1146 = vmatpush1.xpose.msra.mxu0 0.0
    %1147 = vmatprep.subr.mxu0 0.0
    %1148 = vmatpush1.xpose.msra.mxu0 0.0
    %1149 = vmatprep.subr.mxu0 0.0
    %1150 = vmatpush1.xpose.msra.mxu0 0.0
    %1151 = vmatprep.subr.mxu0 0.0
    %1152 = vmatpush1.xpose.msra.mxu0 0.0
    %1153 = vmatprep.subr.mxu0 0.0
    %1154 = vmatpush1.xpose.msra.mxu0 0.0
    %1155 = vmatprep.subr.mxu0 0.0
    %1156 = vmatpush1.xpose.msra.mxu0 0.0
    %1157 = vmatprep.subr.mxu0 0.0
    %1158 = vmatpush1.xpose.msra.mxu0 0.0
    %1159 = vmatprep.subr.mxu0 0.0
    %1160 = vmatpush1.xpose.msra.mxu0 0.0
    %1161 = vmatprep.subr.mxu0 0.0
    %1162 = vmatpush1.xpose.msra.mxu0 0.0
    %1163 = vmatprep.subr.mxu0 0.0
    %1164 = vmatpush1.xpose.msra.mxu0 0.0
    %1165 = vmatprep.subr.mxu0 0.0
    %1166 = vmatpush1.xpose.msra.mxu0 0.0
    %1167 = vmatprep.subr.mxu0 0.0
    %1168 = vmatpush1.xpose.msra.mxu0 0.0
    %1169 = vmatprep.mubr.f32.mxu0 0.0
    %1170 = vmatmul.mubr.f32.gmra.mrb[0].mxu0 %v1101
    %v1171 = vpop.f32.mrb[0].mxu0
    %v1172 = vadd.f32 %v429, %v1171
    %v1173 = vpop.f32.mrb[0].mxu0
    %1174 = vdwg.mxu0
    %1175 = vrot.lane.b32.xlu0 %v224, 112
    %v1176 = vpop.permute.xlu0 %1175
    %1177 = vrot.lane.b32.xlu0 %v314, 112
    %v1178 = vpop.permute.xlu0 %1177
    %v1179 = vsel %vm431, %v1176, 0
    %v1181 = vsel %vm431, %v1178, 0
    %1183 = vmatprep.subr.mxu0 0.0
    %1184 = vmatpush1.xpose.msra.mxu0 %v1181
    %1185 = vmatprep.subr.mxu0 0.0
    %1186 = vmatpush1.xpose.msra.mxu0 0.0
    %1187 = vmatprep.subr.mxu0 0.0
    %1188 = vmatpush1.xpose.msra.mxu0 0.0
    %1189 = vmatprep.subr.mxu0 0.0
    %1190 = vmatpush1.xpose.msra.mxu0 0.0
    %1191 = vmatprep.subr.mxu0 0.0
    %1192 = vmatpush1.xpose.msra.mxu0 0.0
    %1193 = vmatprep.subr.mxu0 0.0
    %1194 = vmatpush1.xpose.msra.mxu0 0.0
    %1195 = vmatprep.subr.mxu0 0.0
    %1196 = vmatpush1.xpose.msra.mxu0 0.0
    %1197 = vmatprep.subr.mxu0 0.0
    %1198 = vmatpush1.xpose.msra.mxu0 0.0
    %1199 = vmatprep.subr.mxu0 0.0
    %1200 = vmatpush1.xpose.msra.mxu0 0.0
    %1201 = vmatprep.subr.mxu0 0.0
    %1202 = vmatpush1.xpose.msra.mxu0 0.0
    %1203 = vmatprep.subr.mxu0 0.0
    %1204 = vmatpush1.xpose.msra.mxu0 0.0
    %1205 = vmatprep.subr.mxu0 0.0
    %1206 = vmatpush1.xpose.msra.mxu0 0.0
    %1207 = vmatprep.subr.mxu0 0.0
    %1208 = vmatpush1.xpose.msra.mxu0 0.0
    %1209 = vmatprep.subr.mxu0 0.0
    %1210 = vmatpush1.xpose.msra.mxu0 0.0
    %1211 = vmatprep.subr.mxu0 0.0
    %1212 = vmatpush1.xpose.msra.mxu0 0.0
    %1213 = vmatprep.subr.mxu0 0.0
    %1214 = vmatpush1.xpose.msra.mxu0 0.0
    %1215 = vmatprep.subr.mxu0 0.0
    %1216 = vmatpush1.xpose.msra.mxu0 0.0
    %1217 = vmatprep.subr.mxu0 0.0
    %1218 = vmatpush1.xpose.msra.mxu0 0.0
    %1219 = vmatprep.subr.mxu0 0.0
    %1220 = vmatpush1.xpose.msra.mxu0 0.0
    %1221 = vmatprep.subr.mxu0 0.0
    %1222 = vmatpush1.xpose.msra.mxu0 0.0
    %1223 = vmatprep.subr.mxu0 0.0
    %1224 = vmatpush1.xpose.msra.mxu0 0.0
    %1225 = vmatprep.subr.mxu0 0.0
    %1226 = vmatpush1.xpose.msra.mxu0 0.0
    %1227 = vmatprep.subr.mxu0 0.0
    %1228 = vmatpush1.xpose.msra.mxu0 0.0
    %1229 = vmatprep.subr.mxu0 0.0
    %1230 = vmatpush1.xpose.msra.mxu0 0.0
    %1231 = vmatprep.subr.mxu0 0.0
    %1232 = vmatpush1.xpose.msra.mxu0 0.0
    %1233 = vmatprep.subr.mxu0 0.0
    %1234 = vmatpush1.xpose.msra.mxu0 0.0
    %1235 = vmatprep.subr.mxu0 0.0
    %1236 = vmatpush1.xpose.msra.mxu0 0.0
    %1237 = vmatprep.subr.mxu0 0.0
    %1238 = vmatpush1.xpose.msra.mxu0 0.0
    %1239 = vmatprep.subr.mxu0 0.0
    %1240 = vmatpush1.xpose.msra.mxu0 0.0
    %1241 = vmatprep.subr.mxu0 0.0
    %1242 = vmatpush1.xpose.msra.mxu0 0.0
    %1243 = vmatprep.subr.mxu0 0.0
    %1244 = vmatpush1.xpose.msra.mxu0 0.0
    %1245 = vmatprep.subr.mxu0 0.0
    %1246 = vmatpush1.xpose.msra.mxu0 0.0
    %1247 = vmatprep.mubr.f32.mxu0 0.0
    %1248 = vmatmul.mubr.f32.gmra.mrb[0].mxu0 %v1179
    %v1249 = vpop.f32.mrb[0].mxu0
    %v1250 = vadd.f32 %v430, %v1249
    %v1251 = vpop.f32.mrb[0].mxu0
    %1252 = vdwg.mxu0
    %v1253 = vsel %vm431, %v1172, -inf
    %1254 = vmax.xlane.f32.xlu0 %v1253
    %v1255 = vpop.xlane.xlu0 %1254
    %v1256 = vsel %vm431, %v1250, -inf
    %1257 = vmax.xlane.f32.xlu0 %v1256
    %v1258 = vpop.xlane.xlu0 %1257
    %v1259 = vsub.f32 %v1172, %v1255
    %v1260 = vsub.f32 %v1250, %v1258
    %v1261 = vmul.f32 %v1259, 1.442695
    %v1262 = vpow.pop %v1261
    %v1263 = vmul.f32 %v1260, 1.442695
    %v1264 = vpow.pop %v1263
    %v1265 = vsel %vm431, %v1262, 0.0
    %1266 = vadd.xlane.f32.xlu0 %v1265
    %v1267 = vpop.xlane.xlu0 %1266
    %v1268 = vsel %vm431, %v1264, 0.0
    %1269 = vadd.xlane.f32.xlu0 %v1268
    %v1270 = vpop.xlane.xlu0 %1269
    %v1271 = vrcp.pop %v1267
    %v1272 = vrcp.pop %v1270
    %v1273 = vmul.f32 %v1262, %v1271
    %v1274 = vmul.f32 %v1264, %v1272
    %1275 = vrot.lane.b32.xlu0 %v401, 112
    %v1276 = vpop.permute.xlu0 %1275
    %v1279 = vsel %vm431, %v1273, 0
    %1281 = vmatprep.subr.mxu0 0.0
    %1282 = vmatpush1.msra.mxu0 %v1276
    %1283 = vmatprep.subr.mxu0 0.0
    %1284 = vmatpush1.msra.mxu0 0.0
    %1285 = vmatprep.subr.mxu0 0.0
    %1286 = vmatpush1.msra.mxu0 0.0
    %1287 = vmatprep.subr.mxu0 0.0
    %1288 = vmatpush1.msra.mxu0 0.0
    %1289 = vmatprep.subr.mxu0 0.0
    %1290 = vmatpush1.msra.mxu0 0.0
    %1291 = vmatprep.subr.mxu0 0.0
    %1292 = vmatpush1.msra.mxu0 0.0
    %1293 = vmatprep.subr.mxu0 0.0
    %1294 = vmatpush1.msra.mxu0 0.0
    %1295 = vmatprep.subr.mxu0 0.0
    %1296 = vmatpush1.msra.mxu0 0.0
    %1297 = vmatprep.subr.mxu0 0.0
    %1298 = vmatpush1.msra.mxu0 0.0
    %1299 = vmatprep.subr.mxu0 0.0
    %1300 = vmatpush1.msra.mxu0 0.0
    %1301 = vmatprep.subr.mxu0 0.0
    %1302 = vmatpush1.msra.mxu0 0.0
    %1303 = vmatprep.subr.mxu0 0.0
    %1304 = vmatpush1.msra.mxu0 0.0
    %1305 = vmatprep.subr.mxu0 0.0
    %1306 = vmatpush1.msra.mxu0 0.0
    %1307 = vmatprep.subr.mxu0 0.0
    %1308 = vmatpush1.msra.mxu0 0.0
    %1309 = vmatprep.subr.mxu0 0.0
    %1310 = vmatpush1.msra.mxu0 0.0
    %1311 = vmatprep.subr.mxu0 0.0
    %1312 = vmatpush1.msra.mxu0 0.0
    %1313 = vmatprep.subr.mxu0 0.0
    %1314 = vmatpush1.msra.mxu0 0.0
    %1315 = vmatprep.subr.mxu0 0.0
    %1316 = vmatpush1.msra.mxu0 0.0
    %1317 = vmatprep.subr.mxu0 0.0
    %1318 = vmatpush1.msra.mxu0 0.0
    %1319 = vmatprep.subr.mxu0 0.0
    %1320 = vmatpush1.msra.mxu0 0.0
    %1321 = vmatprep.subr.mxu0 0.0
    %1322 = vmatpush1.msra.mxu0 0.0
    %1323 = vmatprep.subr.mxu0 0.0
    %1324 = vmatpush1.msra.mxu0 0.0
    %1325 = vmatprep.subr.mxu0 0.0
    %1326 = vmatpush1.msra.mxu0 0.0
    %1327 = vmatprep.subr.mxu0 0.0
    %1328 = vmatpush1.msra.mxu0 0.0
    %1329 = vmatprep.subr.mxu0 0.0
    %1330 = vmatpush1.msra.mxu0 0.0
    %1331 = vmatprep.subr.mxu0 0.0
    %1332 = vmatpush1.msra.mxu0 0.0
    %1333 = vmatprep.subr.mxu0 0.0
    %1334 = vmatpush1.msra.mxu0 0.0
    %1335 = vmatprep.subr.mxu0 0.0
    %1336 = vmatpush1.msra.mxu0 0.0
    %1337 = vmatprep.subr.mxu0 0.0
    %1338 = vmatpush1.msra.mxu0 0.0
    %1339 = vmatprep.subr.mxu0 0.0
    %1340 = vmatpush1.msra.mxu0 0.0
    %1341 = vmatprep.subr.mxu0 0.0
    %1342 = vmatpush1.msra.mxu0 0.0
    %1343 = vmatprep.subr.mxu0 0.0
    %1344 = vmatpush1.msra.mxu0 0.0
    %1345 = vmatprep.mubr.f32.mxu0 0.0
    %1346 = vmatmul.mubr.f32.gmra.mrb[0].mxu0 %v1279
    %v1347 = vpop.f32.mrb[0].mxu0
    %v1348 = vadd.f32 0.0, %v1347
    %v1349 = vpop.f32.mrb[0].mxu0
    %1350 = vdwg.mxu0
    %1351 = vrot.lane.b32.xlu0 %v406, 112
    %v1352 = vpop.permute.xlu0 %1351
    %v1355 = vsel %vm431, %v1274, 0
    %1357 = vmatprep.subr.mxu0 0.0
    %1358 = vmatpush1.msra.mxu0 %v1352
    %1359 = vmatprep.subr.mxu0 0.0
    %1360 = vmatpush1.msra.mxu0 0.0
    %1361 = vmatprep.subr.mxu0 0.0
    %1362 = vmatpush1.msra.mxu0 0.0
    %1363 = vmatprep.subr.mxu0 0.0
    %1364 = vmatpush1.msra.mxu0 0.0
    %1365 = vmatprep.subr.mxu0 0.0
    %1366 = vmatpush1.msra.mxu0 0.0
    %1367 = vmatprep.subr.mxu0 0.0
    %1368 = vmatpush1.msra.mxu0 0.0
    %1369 = vmatprep.subr.mxu0 0.0
    %1370 = vmatpush1.msra.mxu0 0.0
    %1371 = vmatprep.subr.mxu0 0.0
    %1372 = vmatpush1.msra.mxu0 0.0
    %1373 = vmatprep.subr.mxu0 0.0
    %1374 = vmatpush1.msra.mxu0 0.0
    %1375 = vmatprep.subr.mxu0 0.0
    %1376 = vmatpush1.msra.mxu0 0.0
    %1377 = vmatprep.subr.mxu0 0.0
    %1378 = vmatpush1.msra.mxu0 0.0
    %1379 = vmatprep.subr.mxu0 0.0
    %1380 = vmatpush1.msra.mxu0 0.0
    %1381 = vmatprep.subr.mxu0 0.0
    %1382 = vmatpush1.msra.mxu0 0.0
    %1383 = vmatprep.subr.mxu0 0.0
    %1384 = vmatpush1.msra.mxu0 0.0
    %1385 = vmatprep.subr.mxu0 0.0
    %1386 = vmatpush1.msra.mxu0 0.0
    %1387 = vmatprep.subr.mxu0 0.0
    %1388 = vmatpush1.msra.mxu0 0.0
    %1389 = vmatprep.subr.mxu0 0.0
    %1390 = vmatpush1.msra.mxu0 0.0
    %1391 = vmatprep.subr.mxu0 0.0
    %1392 = vmatpush1.msra.mxu0 0.0
    %1393 = vmatprep.subr.mxu0 0.0
    %1394 = vmatpush1.msra.mxu0 0.0
    %1395 = vmatprep.subr.mxu0 0.0
    %1396 = vmatpush1.msra.mxu0 0.0
    %1397 = vmatprep.subr.mxu0 0.0
    %1398 = vmatpush1.msra.mxu0 0.0
    %1399 = vmatprep.subr.mxu0 0.0
    %1400 = vmatpush1.msra.mxu0 0.0
    %1401 = vmatprep.subr.mxu0 0.0
    %1402 = vmatpush1.msra.mxu0 0.0
    %1403 = vmatprep.subr.mxu0 0.0
    %1404 = vmatpush1.msra.mxu0 0.0
    %1405 = vmatprep.subr.mxu0 0.0
    %1406 = vmatpush1.msra.mxu0 0.0
    %1407 = vmatprep.subr.mxu0 0.0
    %1408 = vmatpush1.msra.mxu0 0.0
    %1409 = vmatprep.subr.mxu0 0.0
    %1410 = vmatpush1.msra.mxu0 0.0
    %1411 = vmatprep.subr.mxu0 0.0
    %1412 = vmatpush1.msra.mxu0 0.0
    %1413 = vmatprep.subr.mxu0 0.0
    %1414 = vmatpush1.msra.mxu0 0.0
    %1415 = vmatprep.subr.mxu0 0.0
    %1416 = vmatpush1.msra.mxu0 0.0
    %1417 = vmatprep.subr.mxu0 0.0
    %1418 = vmatpush1.msra.mxu0 0.0
    %1419 = vmatprep.subr.mxu0 0.0
    %1420 = vmatpush1.msra.mxu0 0.0
    %1421 = vmatprep.mubr.f32.mxu0 0.0
    %1422 = vmatmul.mubr.f32.gmra.mrb[0].mxu0 %v1355
    %v1423 = vpop.f32.mrb[0].mxu0
    %v1424 = vadd.f32 0.0, %v1423
    %v1425 = vpop.f32.mrb[0].mxu0
    %1426 = vdwg.mxu0
    %1429 = vrot.lane.b32.xlu0 %v1348, 16
    %v1430 = vpop.permute.xlu0 %1429
    %1431 = vrot.lane.b32.xlu0 %v1424, 16
    %v1432 = vpop.permute.xlu0 %1431
    %vm1435 = vcmask 195712
    %1436 = vst.msk [vmem:[#allocation2] sm:$0xff] %vm1435, %v1430
    %1437 = vst.msk [vmem:[#allocation2 + $0x8] sm:$0xff] %vm1435, %v1432
    %1438 = vrot.lane.b32.xlu0 %v223, 104
    %v1439 = vpop.permute.xlu0 %1438
    %1440 = vrot.lane.b32.xlu0 %v309, 104
    %v1441 = vpop.permute.xlu0 %1440
    %v1442 = vsel %vm431, %v1439, 0
    %v1444 = vsel %vm431, %v1441, 0
    %1446 = vmatprep.subr.mxu0 0.0
    %1447 = vmatpush1.xpose.msra.mxu0 %v1444
    %1448 = vmatprep.subr.mxu0 0.0
    %1449 = vmatpush1.xpose.msra.mxu0 0.0
    %1450 = vmatprep.subr.mxu0 0.0
    %1451 = vmatpush1.xpose.msra.mxu0 0.0
    %1452 = vmatprep.subr.mxu0 0.0
    %1453 = vmatpush1.xpose.msra.mxu0 0.0
    %1454 = vmatprep.subr.mxu0 0.0
    %1455 = vmatpush1.xpose.msra.mxu0 0.0
    %1456 = vmatprep.subr.mxu0 0.0
    %1457 = vmatpush1.xpose.msra.mxu0 0.0
    %1458 = vmatprep.subr.mxu0 0.0
    %1459 = vmatpush1.xpose.msra.mxu0 0.0
    %1460 = vmatprep.subr.mxu0 0.0
    %1461 = vmatpush1.xpose.msra.mxu0 0.0
    %1462 = vmatprep.subr.mxu0 0.0
    %1463 = vmatpush1.xpose.msra.mxu0 0.0
    %1464 = vmatprep.subr.mxu0 0.0
    %1465 = vmatpush1.xpose.msra.mxu0 0.0
    %1466 = vmatprep.subr.mxu0 0.0
    %1467 = vmatpush1.xpose.msra.mxu0 0.0
    %1468 = vmatprep.subr.mxu0 0.0
    %1469 = vmatpush1.xpose.msra.mxu0 0.0
    %1470 = vmatprep.subr.mxu0 0.0
    %1471 = vmatpush1.xpose.msra.mxu0 0.0
    %1472 = vmatprep.subr.mxu0 0.0
    %1473 = vmatpush1.xpose.msra.mxu0 0.0
    %1474 = vmatprep.subr.mxu0 0.0
    %1475 = vmatpush1.xpose.msra.mxu0 0.0
    %1476 = vmatprep.subr.mxu0 0.0
    %1477 = vmatpush1.xpose.msra.mxu0 0.0
    %1478 = vmatprep.subr.mxu0 0.0
    %1479 = vmatpush1.xpose.msra.mxu0 0.0
    %1480 = vmatprep.subr.mxu0 0.0
    %1481 = vmatpush1.xpose.msra.mxu0 0.0
    %1482 = vmatprep.subr.mxu0 0.0
    %1483 = vmatpush1.xpose.msra.mxu0 0.0
    %1484 = vmatprep.subr.mxu0 0.0
    %1485 = vmatpush1.xpose.msra.mxu0 0.0
    %1486 = vmatprep.subr.mxu0 0.0
    %1487 = vmatpush1.xpose.msra.mxu0 0.0
    %1488 = vmatprep.subr.mxu0 0.0
    %1489 = vmatpush1.xpose.msra.mxu0 0.0
    %1490 = vmatprep.subr.mxu0 0.0
    %1491 = vmatpush1.xpose.msra.mxu0 0.0
    %1492 = vmatprep.subr.mxu0 0.0
    %1493 = vmatpush1.xpose.msra.mxu0 0.0
    %1494 = vmatprep.subr.mxu0 0.0
    %1495 = vmatpush1.xpose.msra.mxu0 0.0
    %1496 = vmatprep.subr.mxu0 0.0
    %1497 = vmatpush1.xpose.msra.mxu0 0.0
    %1498 = vmatprep.subr.mxu0 0.0
    %1499 = vmatpush1.xpose.msra.mxu0 0.0
    %1500 = vmatprep.subr.mxu0 0.0
    %1501 = vmatpush1.xpose.msra.mxu0 0.0
    %1502 = vmatprep.subr.mxu0 0.0
    %1503 = vmatpush1.xpose.msra.mxu0 0.0
    %1504 = vmatprep.subr.mxu0 0.0
    %1505 = vmatpush1.xpose.msra.mxu0 0.0
    %1506 = vmatprep.subr.mxu0 0.0
    %1507 = vmatpush1.xpose.msra.mxu0 0.0
    %1508 = vmatprep.subr.mxu0 0.0
    %1509 = vmatpush1.xpose.msra.mxu0 0.0
    %1510 = vmatprep.mubr.f32.mxu0 0.0
    %1511 = vmatmul.mubr.f32.gmra.mrb[0].mxu0 %v1442
    %v1512 = vpop.f32.mrb[0].mxu0
    %v1513 = vadd.f32 %v429, %v1512
    %v1514 = vpop.f32.mrb[0].mxu0
    %1515 = vdwg.mxu0
    %1516 = vrot.lane.b32.xlu0 %v224, 104
    %v1517 = vpop.permute.xlu0 %1516
    %1518 = vrot.lane.b32.xlu0 %v314, 104
    %v1519 = vpop.permute.xlu0 %1518
    %v1520 = vsel %vm431, %v1517, 0
    %v1522 = vsel %vm431, %v1519, 0
    %1524 = vmatprep.subr.mxu0 0.0
    %1525 = vmatpush1.xpose.msra.mxu0 %v1522
    %1526 = vmatprep.subr.mxu0 0.0
    %1527 = vmatpush1.xpose.msra.mxu0 0.0
    %1528 = vmatprep.subr.mxu0 0.0
    %1529 = vmatpush1.xpose.msra.mxu0 0.0
    %1530 = vmatprep.subr.mxu0 0.0
    %1531 = vmatpush1.xpose.msra.mxu0 0.0
    %1532 = vmatprep.subr.mxu0 0.0
    %1533 = vmatpush1.xpose.msra.mxu0 0.0
    %1534 = vmatprep.subr.mxu0 0.0
    %1535 = vmatpush1.xpose.msra.mxu0 0.0
    %1536 = vmatprep.subr.mxu0 0.0
    %1537 = vmatpush1.xpose.msra.mxu0 0.0
    %1538 = vmatprep.subr.mxu0 0.0
    %1539 = vmatpush1.xpose.msra.mxu0 0.0
    %1540 = vmatprep.subr.mxu0 0.0
    %1541 = vmatpush1.xpose.msra.mxu0 0.0
    %1542 = vmatprep.subr.mxu0 0.0
    %1543 = vmatpush1.xpose.msra.mxu0 0.0
    %1544 = vmatprep.subr.mxu0 0.0
    %1545 = vmatpush1.xpose.msra.mxu0 0.0
    %1546 = vmatprep.subr.mxu0 0.0
    %1547 = vmatpush1.xpose.msra.mxu0 0.0
    %1548 = vmatprep.subr.mxu0 0.0
    %1549 = vmatpush1.xpose.msra.mxu0 0.0
    %1550 = vmatprep.subr.mxu0 0.0
    %1551 = vmatpush1.xpose.msra.mxu0 0.0
    %1552 = vmatprep.subr.mxu0 0.0
    %1553 = vmatpush1.xpose.msra.mxu0 0.0
    %1554 = vmatprep.subr.mxu0 0.0
    %1555 = vmatpush1.xpose.msra.mxu0 0.0
    %1556 = vmatprep.subr.mxu0 0.0
    %1557 = vmatpush1.xpose.msra.mxu0 0.0
    %1558 = vmatprep.subr.mxu0 0.0
    %1559 = vmatpush1.xpose.msra.mxu0 0.0
    %1560 = vmatprep.subr.mxu0 0.0
    %1561 = vmatpush1.xpose.msra.mxu0 0.0
    %1562 = vmatprep.subr.mxu0 0.0
    %1563 = vmatpush1.xpose.msra.mxu0 0.0
    %1564 = vmatprep.subr.mxu0 0.0
    %1565 = vmatpush1.xpose.msra.mxu0 0.0
    %1566 = vmatprep.subr.mxu0 0.0
    %1567 = vmatpush1.xpose.msra.mxu0 0.0
    %1568 = vmatprep.subr.mxu0 0.0
    %1569 = vmatpush1.xpose.msra.mxu0 0.0
    %1570 = vmatprep.subr.mxu0 0.0
    %1571 = vmatpush1.xpose.msra.mxu0 0.0
    %1572 = vmatprep.subr.mxu0 0.0
    %1573 = vmatpush1.xpose.msra.mxu0 0.0
    %1574 = vmatprep.subr.mxu0 0.0
    %1575 = vmatpush1.xpose.msra.mxu0 0.0
    %1576 = vmatprep.subr.mxu0 0.0
    %1577 = vmatpush1.xpose.msra.mxu0 0.0
    %1578 = vmatprep.subr.mxu0 0.0
    %1579 = vmatpush1.xpose.msra.mxu0 0.0
    %1580 = vmatprep.subr.mxu0 0.0
    %1581 = vmatpush1.xpose.msra.mxu0 0.0
    %1582 = vmatprep.subr.mxu0 0.0
    %1583 = vmatpush1.xpose.msra.mxu0 0.0
    %1584 = vmatprep.subr.mxu0 0.0
    %1585 = vmatpush1.xpose.msra.mxu0 0.0
    %1586 = vmatprep.subr.mxu0 0.0
    %1587 = vmatpush1.xpose.msra.mxu0 0.0
    %1588 = vmatprep.mubr.f32.mxu0 0.0
    %1589 = vmatmul.mubr.f32.gmra.mrb[0].mxu0 %v1520
    %v1590 = vpop.f32.mrb[0].mxu0
    %v1591 = vadd.f32 %v430, %v1590
    %v1592 = vpop.f32.mrb[0].mxu0
    %1593 = vdwg.mxu0
    %v1594 = vsel %vm431, %v1513, -inf
    %1595 = vmax.xlane.f32.xlu0 %v1594
    %v1596 = vpop.xlane.xlu0 %1595
    %v1597 = vsel %vm431, %v1591, -inf
    %1598 = vmax.xlane.f32.xlu0 %v1597
    %v1599 = vpop.xlane.xlu0 %1598
    %v1600 = vsub.f32 %v1513, %v1596
    %v1601 = vsub.f32 %v1591, %v1599
    %v1602 = vmul.f32 %v1600, 1.442695
    %v1603 = vpow.pop %v1602
    %v1604 = vmul.f32 %v1601, 1.442695
    %v1605 = vpow.pop %v1604
    %v1606 = vsel %vm431, %v1603, 0.0
    %1607 = vadd.xlane.f32.xlu0 %v1606
    %v1608 = vpop.xlane.xlu0 %1607
    %v1609 = vsel %vm431, %v1605, 0.0
    %1610 = vadd.xlane.f32.xlu0 %v1609
    %v1611 = vpop.xlane.xlu0 %1610
    %v1612 = vrcp.pop %v1608
    %v1613 = vrcp.pop %v1611
    %v1614 = vmul.f32 %v1603, %v1612
    %v1615 = vmul.f32 %v1605, %v1613
    %1616 = vrot.lane.b32.xlu0 %v401, 104
    %v1617 = vpop.permute.xlu0 %1616
    %v1620 = vsel %vm431, %v1614, 0
    %1622 = vmatprep.subr.mxu0 0.0
    %1623 = vmatpush1.msra.mxu0 %v1617
    %1624 = vmatprep.subr.mxu0 0.0
    %1625 = vmatpush1.msra.mxu0 0.0
    %1626 = vmatprep.subr.mxu0 0.0
    %1627 = vmatpush1.msra.mxu0 0.0
    %1628 = vmatprep.subr.mxu0 0.0
    %1629 = vmatpush1.msra.mxu0 0.0
    %1630 = vmatprep.subr.mxu0 0.0
    %1631 = vmatpush1.msra.mxu0 0.0
    %1632 = vmatprep.subr.mxu0 0.0
    %1633 = vmatpush1.msra.mxu0 0.0
    %1634 = vmatprep.subr.mxu0 0.0
    %1635 = vmatpush1.msra.mxu0 0.0
    %1636 = vmatprep.subr.mxu0 0.0
    %1637 = vmatpush1.msra.mxu0 0.0
    %1638 = vmatprep.subr.mxu0 0.0
    %1639 = vmatpush1.msra.mxu0 0.0
    %1640 = vmatprep.subr.mxu0 0.0
    %1641 = vmatpush1.msra.mxu0 0.0
    %1642 = vmatprep.subr.mxu0 0.0
    %1643 = vmatpush1.msra.mxu0 0.0
    %1644 = vmatprep.subr.mxu0 0.0
    %1645 = vmatpush1.msra.mxu0 0.0
    %1646 = vmatprep.subr.mxu0 0.0
    %1647 = vmatpush1.msra.mxu0 0.0
    %1648 = vmatprep.subr.mxu0 0.0
    %1649 = vmatpush1.msra.mxu0 0.0
    %1650 = vmatprep.subr.mxu0 0.0
    %1651 = vmatpush1.msra.mxu0 0.0
    %1652 = vmatprep.subr.mxu0 0.0
    %1653 = vmatpush1.msra.mxu0 0.0
    %1654 = vmatprep.subr.mxu0 0.0
    %1655 = vmatpush1.msra.mxu0 0.0
    %1656 = vmatprep.subr.mxu0 0.0
    %1657 = vmatpush1.msra.mxu0 0.0
    %1658 = vmatprep.subr.mxu0 0.0
    %1659 = vmatpush1.msra.mxu0 0.0
    %1660 = vmatprep.subr.mxu0 0.0
    %1661 = vmatpush1.msra.mxu0 0.0
    %1662 = vmatprep.subr.mxu0 0.0
    %1663 = vmatpush1.msra.mxu0 0.0
    %1664 = vmatprep.subr.mxu0 0.0
    %1665 = vmatpush1.msra.mxu0 0.0
    %1666 = vmatprep.subr.mxu0 0.0
    %1667 = vmatpush1.msra.mxu0 0.0
    %1668 = vmatprep.subr.mxu0 0.0
    %1669 = vmatpush1.msra.mxu0 0.0
    %1670 = vmatprep.subr.mxu0 0.0
    %1671 = vmatpush1.msra.mxu0 0.0
    %1672 = vmatprep.subr.mxu0 0.0
    %1673 = vmatpush1.msra.mxu0 0.0
    %1674 = vmatprep.subr.mxu0 0.0
    %1675 = vmatpush1.msra.mxu0 0.0
    %1676 = vmatprep.subr.mxu0 0.0
    %1677 = vmatpush1.msra.mxu0 0.0
    %1678 = vmatprep.subr.mxu0 0.0
    %1679 = vmatpush1.msra.mxu0 0.0
    %1680 = vmatprep.subr.mxu0 0.0
    %1681 = vmatpush1.msra.mxu0 0.0
    %1682 = vmatprep.subr.mxu0 0.0
    %1683 = vmatpush1.msra.mxu0 0.0
    %1684 = vmatprep.subr.mxu0 0.0
    %1685 = vmatpush1.msra.mxu0 0.0
    %1686 = vmatprep.mubr.f32.mxu0 0.0
    %1687 = vmatmul.mubr.f32.gmra.mrb[0].mxu0 %v1620
    %v1688 = vpop.f32.mrb[0].mxu0
    %v1689 = vadd.f32 0.0, %v1688
    %v1690 = vpop.f32.mrb[0].mxu0
    %1691 = vdwg.mxu0
    %1692 = vrot.lane.b32.xlu0 %v406, 104
    %v1693 = vpop.permute.xlu0 %1692
    %v1696 = vsel %vm431, %v1615, 0
    %1698 = vmatprep.subr.mxu0 0.0
    %1699 = vmatpush1.msra.mxu0 %v1693
    %1700 = vmatprep.subr.mxu0 0.0
    %1701 = vmatpush1.msra.mxu0 0.0
    %1702 = vmatprep.subr.mxu0 0.0
    %1703 = vmatpush1.msra.mxu0 0.0
    %1704 = vmatprep.subr.mxu0 0.0
    %1705 = vmatpush1.msra.mxu0 0.0
    %1706 = vmatprep.subr.mxu0 0.0
    %1707 = vmatpush1.msra.mxu0 0.0
    %1708 = vmatprep.subr.mxu0 0.0
    %1709 = vmatpush1.msra.mxu0 0.0
    %1710 = vmatprep.subr.mxu0 0.0
    %1711 = vmatpush1.msra.mxu0 0.0
    %1712 = vmatprep.subr.mxu0 0.0
    %1713 = vmatpush1.msra.mxu0 0.0
    %1714 = vmatprep.subr.mxu0 0.0
    %1715 = vmatpush1.msra.mxu0 0.0
    %1716 = vmatprep.subr.mxu0 0.0
    %1717 = vmatpush1.msra.mxu0 0.0
    %1718 = vmatprep.subr.mxu0 0.0
    %1719 = vmatpush1.msra.mxu0 0.0
    %1720 = vmatprep.subr.mxu0 0.0
    %1721 = vmatpush1.msra.mxu0 0.0
    %1722 = vmatprep.subr.mxu0 0.0
    %1723 = vmatpush1.msra.mxu0 0.0
    %1724 = vmatprep.subr.mxu0 0.0
    %1725 = vmatpush1.msra.mxu0 0.0
    %1726 = vmatprep.subr.mxu0 0.0
    %1727 = vmatpush1.msra.mxu0 0.0
    %1728 = vmatprep.subr.mxu0 0.0
    %1729 = vmatpush1.msra.mxu0 0.0
    %1730 = vmatprep.subr.mxu0 0.0
    %1731 = vmatpush1.msra.mxu0 0.0
    %1732 = vmatprep.subr.mxu0 0.0
    %1733 = vmatpush1.msra.mxu0 0.0
    %1734 = vmatprep.subr.mxu0 0.0
    %1735 = vmatpush1.msra.mxu0 0.0
    %1736 = vmatprep.subr.mxu0 0.0
    %1737 = vmatpush1.msra.mxu0 0.0
    %1738 = vmatprep.subr.mxu0 0.0
    %1739 = vmatpush1.msra.mxu0 0.0
    %1740 = vmatprep.subr.mxu0 0.0
    %1741 = vmatpush1.msra.mxu0 0.0
    %1742 = vmatprep.subr.mxu0 0.0
    %1743 = vmatpush1.msra.mxu0 0.0
    %1744 = vmatprep.subr.mxu0 0.0
    %1745 = vmatpush1.msra.mxu0 0.0
    %1746 = vmatprep.subr.mxu0 0.0
    %1747 = vmatpush1.msra.mxu0 0.0
    %1748 = vmatprep.subr.mxu0 0.0
    %1749 = vmatpush1.msra.mxu0 0.0
    %1750 = vmatprep.subr.mxu0 0.0
    %1751 = vmatpush1.msra.mxu0 0.0
    %1752 = vmatprep.subr.mxu0 0.0
    %1753 = vmatpush1.msra.mxu0 0.0
    %1754 = vmatprep.subr.mxu0 0.0
    %1755 = vmatpush1.msra.mxu0 0.0
    %1756 = vmatprep.subr.mxu0 0.0
    %1757 = vmatpush1.msra.mxu0 0.0
    %1758 = vmatprep.subr.mxu0 0.0
    %1759 = vmatpush1.msra.mxu0 0.0
    %1760 = vmatprep.subr.mxu0 0.0
    %1761 = vmatpush1.msra.mxu0 0.0
    %1762 = vmatprep.mubr.f32.mxu0 0.0
    %1763 = vmatmul.mubr.f32.gmra.mrb[0].mxu0 %v1696
    %v1764 = vpop.f32.mrb[0].mxu0
    %v1765 = vadd.f32 0.0, %v1764
    %v1766 = vpop.f32.mrb[0].mxu0
    %1767 = vdwg.mxu0
    %1770 = vrot.lane.b32.xlu0 %v1689, 24
    %v1771 = vpop.permute.xlu0 %1770
    %1772 = vrot.lane.b32.xlu0 %v1765, 24
    %v1773 = vpop.permute.xlu0 %1772
    %vm1776 = vcmask 261312
    %1777 = vst.msk [vmem:[#allocation2] sm:$0xff] %vm1776, %v1771
    %1778 = vst.msk [vmem:[#allocation2 + $0x8] sm:$0xff] %vm1776, %v1773
    %v1779 = vld [vmem:[#allocation2] sm:$0xff]
    %v1780 = vld [vmem:[#allocation2 + $0x8] sm:$0xff]
    %v1781 = vld [vmem:[%s10] sm:$0xff]
    %v1782 = vld [vmem:[%s10 + $0x8] sm:$0xff]
    %v1783 = vld [vmem:[%s10 + $0x10] sm:$0xff]
    %v1784 = vld [vmem:[%s10 + $0x18] sm:$0xff]
    %v1785 = vld [vmem:[%s11] sm:$0x1]
    %v1787 = vlaneseq
    %v1788 = vshrl.u32 %v1787, 7
    %v1789 = vsub.s32 0, %v1788
    %v1790 = vrot.slane %v1785, %v1789
    %v1793 = vsel %vm141, %v1779, 0
    %v1796 = vsel %vm141, %v1780, 0
    %1798 = vmatprep.subr.mxu0 0.0
    %1799 = vmatpush1.msra.mxu0 %v1781
    %1800 = vmatprep.subr.mxu0 0.0
    %1801 = vmatpush1.msra.mxu0 %v1782
    %1802 = vmatprep.subr.mxu0 0.0
    %1803 = vmatpush1.msra.mxu0 %v1783
    %1804 = vmatprep.subr.mxu0 0.0
    %1805 = vmatpush1.msra.mxu0 %v1784
    %1806 = vmatprep.subr.mxu0 0.0
    %1807 = vmatpush1.msra.mxu0 0.0
    %1808 = vmatprep.subr.mxu0 0.0
    %1809 = vmatpush1.msra.mxu0 0.0
    %1810 = vmatprep.subr.mxu0 0.0
    %1811 = vmatpush1.msra.mxu0 0.0
    %1812 = vmatprep.subr.mxu0 0.0
    %1813 = vmatpush1.msra.mxu0 0.0
    %1814 = vmatprep.subr.mxu0 0.0
    %1815 = vmatpush1.msra.mxu0 0.0
    %1816 = vmatprep.subr.mxu0 0.0
    %1817 = vmatpush1.msra.mxu0 0.0
    %1818 = vmatprep.subr.mxu0 0.0
    %1819 = vmatpush1.msra.mxu0 0.0
    %1820 = vmatprep.subr.mxu0 0.0
    %1821 = vmatpush1.msra.mxu0 0.0
    %1822 = vmatprep.subr.mxu0 0.0
    %1823 = vmatpush1.msra.mxu0 0.0
    %1824 = vmatprep.subr.mxu0 0.0
    %1825 = vmatpush1.msra.mxu0 0.0
    %1826 = vmatprep.subr.mxu0 0.0
    %1827 = vmatpush1.msra.mxu0 0.0
    %1828 = vmatprep.subr.mxu0 0.0
    %1829 = vmatpush1.msra.mxu0 0.0
    %1830 = vmatprep.subr.mxu0 0.0
    %1831 = vmatpush1.msra.mxu0 0.0
    %1832 = vmatprep.subr.mxu0 0.0
    %1833 = vmatpush1.msra.mxu0 0.0
    %1834 = vmatprep.subr.mxu0 0.0
    %1835 = vmatpush1.msra.mxu0 0.0
    %1836 = vmatprep.subr.mxu0 0.0
    %1837 = vmatpush1.msra.mxu0 0.0
    %1838 = vmatprep.subr.mxu0 0.0
    %1839 = vmatpush1.msra.mxu0 0.0
    %1840 = vmatprep.subr.mxu0 0.0
    %1841 = vmatpush1.msra.mxu0 0.0
    %1842 = vmatprep.subr.mxu0 0.0
    %1843 = vmatpush1.msra.mxu0 0.0
    %1844 = vmatprep.subr.mxu0 0.0
    %1845 = vmatpush1.msra.mxu0 0.0
    %1846 = vmatprep.subr.mxu0 0.0
    %1847 = vmatpush1.msra.mxu0 0.0
    %1848 = vmatprep.subr.mxu0 0.0
    %1849 = vmatpush1.msra.mxu0 0.0
    %1850 = vmatprep.subr.mxu0 0.0
    %1851 = vmatpush1.msra.mxu0 0.0
    %1852 = vmatprep.subr.mxu0 0.0
    %1853 = vmatpush1.msra.mxu0 0.0
    %1854 = vmatprep.subr.mxu0 0.0
    %1855 = vmatpush1.msra.mxu0 0.0
    %1856 = vmatprep.subr.mxu0 0.0
    %1857 = vmatpush1.msra.mxu0 0.0
    %1858 = vmatprep.subr.mxu0 0.0
    %1859 = vmatpush1.msra.mxu0 0.0
    %1860 = vmatprep.subr.mxu0 0.0
    %1861 = vmatpush1.msra.mxu0 0.0
    %1862 = vmatprep.mubr.f32.mxu0 0.0
    %1863 = vmatmul.mubr.f32.gmra.mrb[0].mxu0 %v1793
    %v1864 = vpop.f32.mrb[0].mxu0
    %v1865 = vadd.f32 %v1790, %v1864
    %v1866 = vpop.f32.mrb[0].mxu0
    %1867 = vmatprep.mubr.f32.mxu0 0.0
    %1868 = vmatmul.mubr.f32.gmra.mrb[0].mxu0 %v1796
    %v1869 = vpop.f32.mrb[0].mxu0
    %v1870 = vadd.f32 %v1790, %v1869
    %v1871 = vpop.f32.mrb[0].mxu0
    %1872 = vdwg.mxu0
    %1873 = vst [vmem:[#allocation14] sm:$0xff] %v1865
    %1874 = vst [vmem:[#allocation14 + $0x8] sm:$0xff] %v1870
    // Predicated region
    $region74: #{tpu_custom_call.1} parent=1 // pred_check
      _
    $region75: #{tpu_custom_call.1} parent=1 // pred_check_branch
      %1876 = sbr.rel (0) target = $region77
    $region76: #{tpu_custom_call.1} parent=1 // pred_region
      %s1878 = ssub.s32 256, 256
      %1879 = vsyncadd [#allocation5], %s1878
      %s1880 = sshll.u32 [#allocation14], 4
      %s1881 = int_to_ptr.vmem [resolvable:$true] %s1880
      %1886 = dma.vmem_to_hbm [thread:$0]  %s1881, 256, %s12, [#allocation5], 128, 128, 8
    $region77: #{tpu_custom_call.1} parent=1 // pred_fallthru
      _
    // Predicated region
    $region78: #{tpu_custom_call.1} parent=1 // pred_check
      _
    $region79: #{tpu_custom_call.1} parent=1 // pred_check_branch
      %1888 = sbr.rel (0) target = $region81
    $region80: #{tpu_custom_call.1} parent=1 // pred_region
      %1889 = dma.done [#allocation5], 256
    $region81: #{tpu_custom_call.1} parent=1 // pred_fallthru
      _
    %1890 = vsyncpa [#allocation4], 1
    %1891 = vsyncpa [#allocation7], 1
    %1892 = vsyncpa [#allocation10], 1
    %1893 = vsyncpa [#allocation13], 1
    %1894 = vsyncpa [#allocation5], 1

</llo_original>
